<compile_context>
chip_gen: v5e
topology: v5e:2x2
jax: 0.10.0
libtpu: 0.0.40
codegen_flags: <defaults>
</compile_context>

<pallas_src>
import functools

import jax
import jax.numpy as jnp
from jax import lax
from jax.experimental import pallas as pl
from jax.experimental.pallas import tpu as pltpu


# ----------------------------------------------------------------------------
# Fused kernel: 4x (GATConv + ELU)  ->  global_mean_pool  ->  Classifier
# ----------------------------------------------------------------------------
def _gatnet_kernel(x_ref, adj_ref, w0_ref, wrest_ref, asrc_ref, b_ref,
                   pool_ref, w1_ref, b1_ref, w2_ref, b2_ref,
                   logp_ref, feat_ref, *,
                   n_layers, n_heads, hc, row_tile, use_bf16_exp):
    n_nodes = adj_ref.shape[0]
    c = hc // n_heads
    neg_inf = jnp.float32(-1e30)

    # Layer-0 input features (read once); activations are carried as bf16 values.
    x_cur = x_ref[...].astype(jnp.bfloat16)                       # (N, F_in)

    for layer in range(n_layers):                                 # L=4, unrolled
        w_aug = w0_ref[...] if layer == 0 else wrest_ref[layer - 1]  # (F, hc+H) bf16
        a_srcT = asrc_ref[layer]                                  # (H, hc) bf16
        bias = b_ref[layer]                                       # (1, hc) f32

        # ONE MXU matmul gives transformed features AND per-head dst scores
        # (att_dst folded into the weight on the host: [W | W @ att_dst_blk]).
        tmp = jnp.dot(x_cur, w_aug, preferred_element_type=jnp.float32)  # (N, hc+H)
        xp_b = tmp[:, :hc].astype(jnp.bfloat16)                   # (N, hc)
        a_dst = tmp[:, hc:]                                       # (N, H) f32

        # Per-head src scores directly in row layout via an NT matmul
        # (same q @ k^T dot_general pattern as flash attention -> no big transpose).
        a_src_rows = lax.dot_general(a_srcT, xp_b, (((1,), (1,)), ((), ())),
                                     preferred_element_type=jnp.float32)  # (H, N)

        strips = []
        # Static strip loop: exactly one strip at N <= 128.
        # TODO(synk): lax.fori_loop + VMEM scratch stores for large N.
        for rt in range(n_nodes // row_tile):
            r0 = rt * row_tile
            # int8 adjacency, widened to i32 so the compare's mask layout matches
            # the f32 scores (integer compare, no int->float convert).
            mask = adj_ref[r0:r0 + row_tile, :].astype(jnp.int32) != 0   # (TM, N)
            head_outs = []
            for h in range(n_heads):                              # H=4, unrolled
                e = a_dst[r0:r0 + row_tile, h:h + 1] + a_src_rows[h:h + 1, :]
                e = jnp.maximum(e, 0.2 * e)                       # LeakyReLU(0.2)
                e = jnp.where(mask, e, neg_inf)                   # mask non-edges (f32)
                e = e - jnp.max(e, axis=-1, keepdims=True)        # finite (self-loops)
                if use_bf16_exp:
                    # mask + row-max already applied in f32; -1e30 -> exp == 0 in bf16
                    p = jnp.exp(e.astype(jnp.bfloat16))
                    s = jnp.sum(p.astype(jnp.float32), axis=-1, keepdims=True)
                    attn = p * pl.reciprocal(s, approx=True).astype(jnp.bfloat16)
                else:
                    p = jnp.exp(e)
                    inv = pl.reciprocal(jnp.sum(p, axis=-1, keepdims=True), approx=True)
                    attn = (p * inv).astype(jnp.bfloat16)
                head_outs.append(jnp.dot(attn, xp_b[:, h * c:(h + 1) * c],
                                         preferred_element_type=jnp.float32))  # (TM, c)
            # Fused epilogue: concat heads -> (TM, hc), + bias, ELU, single bf16 value
            # (no narrow column stores, no second read-modify-write pass).
            strip = jnp.concatenate(head_outs, axis=-1) + bias
            strip = jnp.where(strip > 0.0, strip,
                              jnp.exp(jnp.minimum(strip, 0.0)) - 1.0)    # ELU
            strips.append(strip.astype(jnp.bfloat16))
        x_cur = strips[0] if len(strips) == 1 else jnp.concatenate(strips, axis=0)

    # global_mean_pool as a row-normalized membership matmul, then the classifier.
    feat = jnp.dot(pool_ref[...], x_cur, preferred_element_type=jnp.float32)  # (G, hc)
    feat_ref[...] = feat                                                       # graph_feature
    h1 = jnp.dot(feat.astype(jnp.bfloat16), w1_ref[...],
                 preferred_element_type=jnp.float32) + b1_ref[...]
    h1 = jnp.maximum(h1, 0.0)                                                  # ReLU
    logits = jnp.dot(h1.astype(jnp.bfloat16), w2_ref[...],
                     preferred_element_type=jnp.float32) + b2_ref[...]
    z = logits - jnp.max(logits, axis=-1, keepdims=True)
    logp_ref[...] = z - jnp.log(jnp.sum(jnp.exp(z), axis=-1, keepdims=True))


# ----------------------------------------------------------------------------
# Host-side glue
# ----------------------------------------------------------------------------
def _augmented_weight(w, att_dst):
    """[W | W @ att_dst_blockdiag]: one matmul yields x' and per-head dst scores."""
    n_heads, c = att_dst.shape
    hc = n_heads * c
    dst_blk = jnp.zeros((hc, n_heads), jnp.float32)
    for h in range(n_heads):
        dst_blk = dst_blk.at[h * c:(h + 1) * c, h].set(att_dst[h])
    return jnp.concatenate([w, w @ dst_blk], axis=1)          # (F_in, hc + H)


def _att_src_rows(att_src):
    """Block-structured (H, hc) matrix: NT matmul gives src scores in row layout."""
    n_heads, c = att_src.shape
    hc = n_heads * c
    m = jnp.zeros((n_heads, hc), jnp.float32)
    for h in range(n_heads):
        m = m.at[h, h * c:(h + 1) * c].set(att_src[h])
    return m


def gatnet_forward(x, edge_index, batch, params, num_graphs):
    n_nodes, _ = x.shape
    convs = params["convs"]
    n_layers = len(convs)
    assert n_layers >= 2
    n_heads, c = convs[0]["att_src"].shape
    hc = n_heads * c

    # Dense adjacency as int8 0/1 mask: adj[dst, src] = 1; self-loops added
    # (PyG GATConv add_self_loops=True).
    adj = jnp.zeros((n_nodes, n_nodes), jnp.int8)
    adj = adj.at[edge_index[1], edge_index[0]].set(1)
    idx = jnp.arange(n_nodes)
    adj = adj.at[idx, idx].set(1)

    # global_mean_pool as a row-normalized membership matmul (bf16 MXU operand).
    onehot = (batch[None, :] == jnp.arange(num_graphs)[:, None]).astype(jnp.float32)
    pool = (onehot / jnp.sum(onehot, axis=1, keepdims=True)).astype(jnp.bfloat16)

    # Layer 0 weight kept separate (F_in -> hc); layers 1..L-1 share (hc -> hc).
    w0 = _augmented_weight(convs[0]["w"], convs[0]["att_dst"]).astype(jnp.bfloat16)
    w_rest = jnp.stack([_augmented_weight(convs[l]["w"], convs[l]["att_dst"])
                        for l in range(1, n_layers)]).astype(jnp.bfloat16)
    asrc_stack = jnp.stack([_att_src_rows(l["att_src"]) for l in convs]
                           ).astype(jnp.bfloat16)              # (L, H, hc)
    bias_stack = jnp.stack([l["bias"] for l in convs])         # (L, 1, hc) f32

    w1 = params["w1"].astype(jnp.bfloat16)
    b1 = params["b1"]
    w2 = params["w2"].astype(jnp.bfloat16)
    b2 = params["b2"]
    num_classes = w2.shape[1]

    row_tile = n_nodes if n_nodes <= 128 else 128
    assert n_nodes % row_tile == 0

    # bf16 softmax exp halves EUP work on v6e/v7x; v5e (no bf16 VPU/EUP) keeps f32.
    try:
        kind = jax.devices()[0].device_kind.lower()
    except Exception:
        kind = ""
    use_bf16_exp = ("v6" in kind) or ("v7" in kind)

    kernel = functools.partial(
        _gatnet_kernel, n_layers=n_layers, n_heads=n_heads, hc=hc,
        row_tile=row_tile, use_bf16_exp=use_bf16_exp)

    vmem = pl.BlockSpec(memory_space=pltpu.MemorySpace.VMEM)   # whole array in VMEM
    logp, graph_feature = pl.pallas_call(
        kernel,
        out_shape=(jax.ShapeDtypeStruct((num_graphs, num_classes), jnp.float32),
                   jax.ShapeDtypeStruct((num_graphs, hc), jnp.float32)),
        in_specs=[vmem] * 11,
        out_specs=(vmem, vmem),
    )(x, adj, w0, w_rest, asrc_stack, bias_stack, pool, w1, b1, w2, b2)
    return logp, graph_feature


def init_params(key, num_features, nhid, num_heads, num_classes, num_layers=4):
    C = nhid // num_heads
    params = {"convs": []}
    fin = num_features
    for _ in range(num_layers):
        key, k1, k2, k3 = jax.random.split(key, 4)
        params["convs"].append({
            "w": jax.random.normal(k1, (fin, num_heads * C), jnp.float32) * 0.1,
            "att_src": jax.random.normal(k2, (num_heads, C), jnp.float32) * 0.1,
            "att_dst": jax.random.normal(k3, (num_heads, C), jnp.float32) * 0.1,
            "bias": jnp.zeros((1, num_heads * C), jnp.float32),
        })
        fin = nhid
    key, k1, k2 = jax.random.split(key, 3)
    params["w1"] = jax.random.normal(k1, (nhid, nhid), jnp.float32) * 0.1
    params["b1"] = jnp.zeros((1, nhid), jnp.float32)
    params["w2"] = jax.random.normal(k2, (nhid, num_classes), jnp.float32) * 0.1
    params["b2"] = jnp.zeros((1, num_classes), jnp.float32)
    return params


if __name__ == "__main__":
    num_features, nhid, num_heads, num_classes = 8, 32, 4, 3
    N, G = 16, 2                       # 2 graphs of 8 nodes each

    key = jax.random.PRNGKey(0)
    key, kx = jax.random.split(key)
    x = jax.random.normal(kx, (N, num_features), jnp.float32)

    # deterministic bidirectional ring edges within each graph (no self loops, no dups)
    src, dst = [], []
    n_g = N // G
    for g in range(G):
        base = g * n_g
        for i in range(n_g):
            a, b = base + i, base + (i + 1) % n_g
            src += [a, b]
            dst += [b, a]
    edge_index = jnp.array([src, dst], dtype=jnp.int32)       # (2, 32)
    batch = jnp.array([g for g in range(G) for _ in range(n_g)], dtype=jnp.int32)

    params = init_params(key, num_features, nhid, num_heads, num_classes)

    logp, graph_feature = gatnet_forward(x, edge_index, batch, params, G)
    jax.block_until_ready((logp, graph_feature))

    assert logp.shape == (G, num_classes)
    assert graph_feature.shape == (G, nhid)
    assert bool(jnp.all(jnp.isfinite(logp)))
    assert bool(jnp.all(jnp.isfinite(graph_feature)))
    # log_softmax rows must normalize to 1 in prob space
    assert jnp.allclose(jnp.sum(jnp.exp(logp), axis=-1), 1.0, atol=1e-4)
    print("KERNEL_OK")
</pallas_src>

<mosaic_0001>
module attributes {stable_mosaic.version = 11 : i64} {
  func.func @_gatnet_kernel(%arg0: memref<16x8xf32, #tpu.memory_space<vmem>>, %arg1: memref<16x16xi8, #tpu.memory_space<vmem>>, %arg2: memref<8x36xbf16, #tpu.memory_space<vmem>>, %arg3: memref<3x32x36xbf16, #tpu.memory_space<vmem>>, %arg4: memref<4x4x32xbf16, #tpu.memory_space<vmem>>, %arg5: memref<4x1x32xf32, #tpu.memory_space<vmem>>, %arg6: memref<2x16xbf16, #tpu.memory_space<vmem>>, %arg7: memref<32x32xbf16, #tpu.memory_space<vmem>>, %arg8: memref<1x32xf32, #tpu.memory_space<vmem>>, %arg9: memref<32x3xbf16, #tpu.memory_space<vmem>>, %arg10: memref<1x3xf32, #tpu.memory_space<vmem>>, %arg11: memref<2x3xf32, #tpu.memory_space<vmem>>, %arg12: memref<2x32xf32, #tpu.memory_space<vmem>>) attributes {dimension_semantics = [], scalar_prefetch = 0 : i64, scratch_operands = 0 : i64, tpu.core_type = #tpu.core_type<tc>} {
    %c0 = arith.constant 0 : index
    %c0_0 = arith.constant 0 : index
    %0 = vector.load %arg0[%c0, %c0_0] : memref<16x8xf32, #tpu.memory_space<vmem>>, vector<16x8xf32>
    %1 = arith.truncf %0 : vector<16x8xf32> to vector<16x8xbf16>
    %c0_1 = arith.constant 0 : index
    %c0_2 = arith.constant 0 : index
    %2 = vector.load %arg2[%c0_1, %c0_2] : memref<8x36xbf16, #tpu.memory_space<vmem>>, vector<8x36xbf16>
    %c0_3 = arith.constant 0 : index
    %c0_4 = arith.constant 0 : index
    %c0_5 = arith.constant 0 : index
    %3 = vector.load %arg4[%c0_3, %c0_4, %c0_5] : memref<4x4x32xbf16, #tpu.memory_space<vmem>>, vector<1x4x32xbf16>
    %4 = vector.shape_cast %3 : vector<1x4x32xbf16> to vector<4x32xbf16>
    %c0_6 = arith.constant 0 : index
    %c0_7 = arith.constant 0 : index
    %c0_8 = arith.constant 0 : index
    %5 = vector.load %arg5[%c0_6, %c0_7, %c0_8] : memref<4x1x32xf32, #tpu.memory_space<vmem>>, vector<1x1x32xf32>
    %6 = vector.shape_cast %5 : vector<1x1x32xf32> to vector<1x32xf32>
    %cst = arith.constant dense<0.000000e+00> : vector<16x36xf32>
    %7 = tpu.matmul %1, %2, %cst {dimension_numbers = #tpu.dot_dimension_numbers<[1], [0], [0], [1], [0, 0, 1, 1], [], []>} : vector<16x8xbf16>, vector<8x36xbf16>, vector<16x36xf32> -> vector<16x36xf32>
    %8 = vector.extract_strided_slice %7 {offsets = [0, 0], sizes = [16, 32], strides = [1, 1]} : vector<16x36xf32> to vector<16x32xf32>
    %9 = arith.truncf %8 : vector<16x32xf32> to vector<16x32xbf16>
    %10 = vector.extract_strided_slice %7 {offsets = [0, 32], sizes = [16, 4], strides = [1, 1]} : vector<16x36xf32> to vector<16x4xf32>
    %cst_9 = arith.constant dense<0.000000e+00> : vector<4x16xf32>
    %11 = tpu.matmul %4, %9, %cst_9 {dimension_numbers = #tpu.dot_dimension_numbers<[1], [1], [0], [0], [0, 0, 1, 0], [], []>} : vector<4x32xbf16>, vector<16x32xbf16>, vector<4x16xf32> -> vector<4x16xf32>
    %c0_10 = arith.constant 0 : index
    %c0_11 = arith.constant 0 : index
    %12 = vector.load %arg1[%c0_10, %c0_11] : memref<16x16xi8, #tpu.memory_space<vmem>>, vector<16x16xi8>
    %13 = arith.extsi %12 : vector<16x16xi8> to vector<16x16xi32>
    %c0_i32 = arith.constant 0 : i32
    %14 = vector.broadcast %c0_i32 : i32 to vector<16x16xi32>
    %15 = arith.cmpi ne, %13, %14 : vector<16x16xi32>
    %16 = vector.extract_strided_slice %10 {offsets = [0, 0], sizes = [16, 1], strides = [1, 1]} : vector<16x4xf32> to vector<16x1xf32>
    %17 = vector.extract_strided_slice %11 {offsets = [0, 0], sizes = [1, 16], strides = [1, 1]} : vector<4x16xf32> to vector<1x16xf32>
    %18 = vector.broadcast %16 : vector<16x1xf32> to vector<16x16xf32>
    %19 = vector.broadcast %17 : vector<1x16xf32> to vector<16x16xf32>
    %20 = arith.addf %18, %19 : vector<16x16xf32>
    %cst_12 = arith.constant 2.000000e-01 : f32
    %21 = vector.broadcast %cst_12 : f32 to vector<16x16xf32>
    %22 = arith.mulf %21, %20 : vector<16x16xf32>
    %23 = arith.maximumf %20, %22 : vector<16x16xf32>
    %cst_13 = arith.constant -1.000000e+30 : f32
    %24 = vector.broadcast %cst_13 : f32 to vector<16x16xf32>
    %25 = arith.select %15, %23, %24 : vector<16x16xi1>, vector<16x16xf32>
    %cst_14 = arith.constant dense<0xFF800000> : vector<16xf32>
    %26 = vector.multi_reduction <maximumf>, %25, %cst_14 [1] : vector<16x16xf32> to vector<16xf32>
    %27 = vector.shape_cast %26 : vector<16xf32> to vector<16x1xf32>
    %28 = vector.broadcast %27 : vector<16x1xf32> to vector<16x16xf32>
    %29 = arith.subf %25, %28 : vector<16x16xf32>
    %30 = math.exp %29 : vector<16x16xf32>
    %cst_15 = arith.constant dense<0.000000e+00> : vector<16xf32>
    %31 = vector.multi_reduction <add>, %30, %cst_15 [1] : vector<16x16xf32> to vector<16xf32>
    %32 = vector.shape_cast %31 : vector<16xf32> to vector<16x1xf32>
    %33 = tpu.reciprocal %32 {approx = true} : vector<16x1xf32> -> vector<16x1xf32>
    %34 = vector.broadcast %33 : vector<16x1xf32> to vector<16x16xf32>
    %35 = arith.mulf %30, %34 : vector<16x16xf32>
    %36 = arith.truncf %35 : vector<16x16xf32> to vector<16x16xbf16>
    %37 = vector.extract_strided_slice %9 {offsets = [0, 0], sizes = [16, 8], strides = [1, 1]} : vector<16x32xbf16> to vector<16x8xbf16>
    %cst_16 = arith.constant dense<0.000000e+00> : vector<16x8xf32>
    %38 = tpu.matmul %36, %37, %cst_16 {dimension_numbers = #tpu.dot_dimension_numbers<[1], [0], [0], [1], [0, 0, 1, 1], [], []>} : vector<16x16xbf16>, vector<16x8xbf16>, vector<16x8xf32> -> vector<16x8xf32>
    %39 = vector.extract_strided_slice %10 {offsets = [0, 1], sizes = [16, 1], strides = [1, 1]} : vector<16x4xf32> to vector<16x1xf32>
    %40 = vector.extract_strided_slice %11 {offsets = [1, 0], sizes = [1, 16], strides = [1, 1]} : vector<4x16xf32> to vector<1x16xf32>
    %41 = vector.broadcast %39 : vector<16x1xf32> to vector<16x16xf32>
    %42 = vector.broadcast %40 : vector<1x16xf32> to vector<16x16xf32>
    %43 = arith.addf %41, %42 : vector<16x16xf32>
    %cst_17 = arith.constant 2.000000e-01 : f32
    %44 = vector.broadcast %cst_17 : f32 to vector<16x16xf32>
    %45 = arith.mulf %44, %43 : vector<16x16xf32>
    %46 = arith.maximumf %43, %45 : vector<16x16xf32>
    %cst_18 = arith.constant -1.000000e+30 : f32
    %47 = vector.broadcast %cst_18 : f32 to vector<16x16xf32>
    %48 = arith.select %15, %46, %47 : vector<16x16xi1>, vector<16x16xf32>
    %cst_19 = arith.constant dense<0xFF800000> : vector<16xf32>
    %49 = vector.multi_reduction <maximumf>, %48, %cst_19 [1] : vector<16x16xf32> to vector<16xf32>
    %50 = vector.shape_cast %49 : vector<16xf32> to vector<16x1xf32>
    %51 = vector.broadcast %50 : vector<16x1xf32> to vector<16x16xf32>
    %52 = arith.subf %48, %51 : vector<16x16xf32>
    %53 = math.exp %52 : vector<16x16xf32>
    %cst_20 = arith.constant dense<0.000000e+00> : vector<16xf32>
    %54 = vector.multi_reduction <add>, %53, %cst_20 [1] : vector<16x16xf32> to vector<16xf32>
    %55 = vector.shape_cast %54 : vector<16xf32> to vector<16x1xf32>
    %56 = tpu.reciprocal %55 {approx = true} : vector<16x1xf32> -> vector<16x1xf32>
    %57 = vector.broadcast %56 : vector<16x1xf32> to vector<16x16xf32>
    %58 = arith.mulf %53, %57 : vector<16x16xf32>
    %59 = arith.truncf %58 : vector<16x16xf32> to vector<16x16xbf16>
    %60 = vector.extract_strided_slice %9 {offsets = [0, 8], sizes = [16, 8], strides = [1, 1]} : vector<16x32xbf16> to vector<16x8xbf16>
    %cst_21 = arith.constant dense<0.000000e+00> : vector<16x8xf32>
    %61 = tpu.matmul %59, %60, %cst_21 {dimension_numbers = #tpu.dot_dimension_numbers<[1], [0], [0], [1], [0, 0, 1, 1], [], []>} : vector<16x16xbf16>, vector<16x8xbf16>, vector<16x8xf32> -> vector<16x8xf32>
    %62 = vector.extract_strided_slice %10 {offsets = [0, 2], sizes = [16, 1], strides = [1, 1]} : vector<16x4xf32> to vector<16x1xf32>
    %63 = vector.extract_strided_slice %11 {offsets = [2, 0], sizes = [1, 16], strides = [1, 1]} : vector<4x16xf32> to vector<1x16xf32>
    %64 = vector.broadcast %62 : vector<16x1xf32> to vector<16x16xf32>
    %65 = vector.broadcast %63 : vector<1x16xf32> to vector<16x16xf32>
    %66 = arith.addf %64, %65 : vector<16x16xf32>
    %cst_22 = arith.constant 2.000000e-01 : f32
    %67 = vector.broadcast %cst_22 : f32 to vector<16x16xf32>
    %68 = arith.mulf %67, %66 : vector<16x16xf32>
    %69 = arith.maximumf %66, %68 : vector<16x16xf32>
    %cst_23 = arith.constant -1.000000e+30 : f32
    %70 = vector.broadcast %cst_23 : f32 to vector<16x16xf32>
    %71 = arith.select %15, %69, %70 : vector<16x16xi1>, vector<16x16xf32>
    %cst_24 = arith.constant dense<0xFF800000> : vector<16xf32>
    %72 = vector.multi_reduction <maximumf>, %71, %cst_24 [1] : vector<16x16xf32> to vector<16xf32>
    %73 = vector.shape_cast %72 : vector<16xf32> to vector<16x1xf32>
    %74 = vector.broadcast %73 : vector<16x1xf32> to vector<16x16xf32>
    %75 = arith.subf %71, %74 : vector<16x16xf32>
    %76 = math.exp %75 : vector<16x16xf32>
    %cst_25 = arith.constant dense<0.000000e+00> : vector<16xf32>
    %77 = vector.multi_reduction <add>, %76, %cst_25 [1] : vector<16x16xf32> to vector<16xf32>
    %78 = vector.shape_cast %77 : vector<16xf32> to vector<16x1xf32>
    %79 = tpu.reciprocal %78 {approx = true} : vector<16x1xf32> -> vector<16x1xf32>
    %80 = vector.broadcast %79 : vector<16x1xf32> to vector<16x16xf32>
    %81 = arith.mulf %76, %80 : vector<16x16xf32>
    %82 = arith.truncf %81 : vector<16x16xf32> to vector<16x16xbf16>
    %83 = vector.extract_strided_slice %9 {offsets = [0, 16], sizes = [16, 8], strides = [1, 1]} : vector<16x32xbf16> to vector<16x8xbf16>
    %cst_26 = arith.constant dense<0.000000e+00> : vector<16x8xf32>
    %84 = tpu.matmul %82, %83, %cst_26 {dimension_numbers = #tpu.dot_dimension_numbers<[1], [0], [0], [1], [0, 0, 1, 1], [], []>} : vector<16x16xbf16>, vector<16x8xbf16>, vector<16x8xf32> -> vector<16x8xf32>
    %85 = vector.extract_strided_slice %10 {offsets = [0, 3], sizes = [16, 1], strides = [1, 1]} : vector<16x4xf32> to vector<16x1xf32>
    %86 = vector.extract_strided_slice %11 {offsets = [3, 0], sizes = [1, 16], strides = [1, 1]} : vector<4x16xf32> to vector<1x16xf32>
    %87 = vector.broadcast %85 : vector<16x1xf32> to vector<16x16xf32>
    %88 = vector.broadcast %86 : vector<1x16xf32> to vector<16x16xf32>
    %89 = arith.addf %87, %88 : vector<16x16xf32>
    %cst_27 = arith.constant 2.000000e-01 : f32
    %90 = vector.broadcast %cst_27 : f32 to vector<16x16xf32>
    %91 = arith.mulf %90, %89 : vector<16x16xf32>
    %92 = arith.maximumf %89, %91 : vector<16x16xf32>
    %cst_28 = arith.constant -1.000000e+30 : f32
    %93 = vector.broadcast %cst_28 : f32 to vector<16x16xf32>
    %94 = arith.select %15, %92, %93 : vector<16x16xi1>, vector<16x16xf32>
    %cst_29 = arith.constant dense<0xFF800000> : vector<16xf32>
    %95 = vector.multi_reduction <maximumf>, %94, %cst_29 [1] : vector<16x16xf32> to vector<16xf32>
    %96 = vector.shape_cast %95 : vector<16xf32> to vector<16x1xf32>
    %97 = vector.broadcast %96 : vector<16x1xf32> to vector<16x16xf32>
    %98 = arith.subf %94, %97 : vector<16x16xf32>
    %99 = math.exp %98 : vector<16x16xf32>
    %cst_30 = arith.constant dense<0.000000e+00> : vector<16xf32>
    %100 = vector.multi_reduction <add>, %99, %cst_30 [1] : vector<16x16xf32> to vector<16xf32>
    %101 = vector.shape_cast %100 : vector<16xf32> to vector<16x1xf32>
    %102 = tpu.reciprocal %101 {approx = true} : vector<16x1xf32> -> vector<16x1xf32>
    %103 = vector.broadcast %102 : vector<16x1xf32> to vector<16x16xf32>
    %104 = arith.mulf %99, %103 : vector<16x16xf32>
    %105 = arith.truncf %104 : vector<16x16xf32> to vector<16x16xbf16>
    %106 = vector.extract_strided_slice %9 {offsets = [0, 24], sizes = [16, 8], strides = [1, 1]} : vector<16x32xbf16> to vector<16x8xbf16>
    %cst_31 = arith.constant dense<0.000000e+00> : vector<16x8xf32>
    %107 = tpu.matmul %105, %106, %cst_31 {dimension_numbers = #tpu.dot_dimension_numbers<[1], [0], [0], [1], [0, 0, 1, 1], [], []>} : vector<16x16xbf16>, vector<16x8xbf16>, vector<16x8xf32> -> vector<16x8xf32>
    %108 = tpu.concatenate %38, %61, %84, %107 in 1 : vector<16x8xf32>, vector<16x8xf32>, vector<16x8xf32>, vector<16x8xf32> -> vector<16x32xf32>
    %109 = vector.broadcast %6 : vector<1x32xf32> to vector<16x32xf32>
    %110 = arith.addf %108, %109 : vector<16x32xf32>
    %cst_32 = arith.constant 0.000000e+00 : f32
    %111 = vector.broadcast %cst_32 : f32 to vector<16x32xf32>
    %112 = arith.cmpf ogt, %110, %111 : vector<16x32xf32>
    %cst_33 = arith.constant 0.000000e+00 : f32
    %113 = vector.broadcast %cst_33 : f32 to vector<16x32xf32>
    %114 = arith.minimumf %110, %113 : vector<16x32xf32>
    %115 = math.exp %114 : vector<16x32xf32>
    %cst_34 = arith.constant 1.000000e+00 : f32
    %116 = vector.broadcast %cst_34 : f32 to vector<16x32xf32>
    %117 = arith.subf %115, %116 : vector<16x32xf32>
    %118 = arith.select %112, %110, %117 : vector<16x32xi1>, vector<16x32xf32>
    %119 = arith.truncf %118 : vector<16x32xf32> to vector<16x32xbf16>
    %c0_35 = arith.constant 0 : index
    %c0_36 = arith.constant 0 : index
    %c0_37 = arith.constant 0 : index
    %120 = vector.load %arg3[%c0_35, %c0_36, %c0_37] : memref<3x32x36xbf16, #tpu.memory_space<vmem>>, vector<1x32x36xbf16>
    %121 = vector.shape_cast %120 : vector<1x32x36xbf16> to vector<32x36xbf16>
    %c1 = arith.constant 1 : index
    %c0_38 = arith.constant 0 : index
    %c0_39 = arith.constant 0 : index
    %122 = vector.load %arg4[%c1, %c0_38, %c0_39] : memref<4x4x32xbf16, #tpu.memory_space<vmem>>, vector<1x4x32xbf16>
    %123 = vector.shape_cast %122 : vector<1x4x32xbf16> to vector<4x32xbf16>
    %c1_40 = arith.constant 1 : index
    %c0_41 = arith.constant 0 : index
    %c0_42 = arith.constant 0 : index
    %124 = vector.load %arg5[%c1_40, %c0_41, %c0_42] : memref<4x1x32xf32, #tpu.memory_space<vmem>>, vector<1x1x32xf32>
    %125 = vector.shape_cast %124 : vector<1x1x32xf32> to vector<1x32xf32>
    %cst_43 = arith.constant dense<0.000000e+00> : vector<16x36xf32>
    %126 = tpu.matmul %119, %121, %cst_43 {dimension_numbers = #tpu.dot_dimension_numbers<[1], [0], [0], [1], [0, 0, 1, 1], [], []>} : vector<16x32xbf16>, vector<32x36xbf16>, vector<16x36xf32> -> vector<16x36xf32>
    %127 = vector.extract_strided_slice %126 {offsets = [0, 0], sizes = [16, 32], strides = [1, 1]} : vector<16x36xf32> to vector<16x32xf32>
    %128 = arith.truncf %127 : vector<16x32xf32> to vector<16x32xbf16>
    %129 = vector.extract_strided_slice %126 {offsets = [0, 32], sizes = [16, 4], strides = [1, 1]} : vector<16x36xf32> to vector<16x4xf32>
    %cst_44 = arith.constant dense<0.000000e+00> : vector<4x16xf32>
    %130 = tpu.matmul %123, %128, %cst_44 {dimension_numbers = #tpu.dot_dimension_numbers<[1], [1], [0], [0], [0, 0, 1, 0], [], []>} : vector<4x32xbf16>, vector<16x32xbf16>, vector<4x16xf32> -> vector<4x16xf32>
    %c0_45 = arith.constant 0 : index
    %c0_46 = arith.constant 0 : index
    %131 = vector.load %arg1[%c0_45, %c0_46] : memref<16x16xi8, #tpu.memory_space<vmem>>, vector<16x16xi8>
    %132 = arith.extsi %131 : vector<16x16xi8> to vector<16x16xi32>
    %c0_i32_47 = arith.constant 0 : i32
    %133 = vector.broadcast %c0_i32_47 : i32 to vector<16x16xi32>
    %134 = arith.cmpi ne, %132, %133 : vector<16x16xi32>
    %135 = vector.extract_strided_slice %129 {offsets = [0, 0], sizes = [16, 1], strides = [1, 1]} : vector<16x4xf32> to vector<16x1xf32>
    %136 = vector.extract_strided_slice %130 {offsets = [0, 0], sizes = [1, 16], strides = [1, 1]} : vector<4x16xf32> to vector<1x16xf32>
    %137 = vector.broadcast %135 : vector<16x1xf32> to vector<16x16xf32>
    %138 = vector.broadcast %136 : vector<1x16xf32> to vector<16x16xf32>
    %139 = arith.addf %137, %138 : vector<16x16xf32>
    %cst_48 = arith.constant 2.000000e-01 : f32
    %140 = vector.broadcast %cst_48 : f32 to vector<16x16xf32>
    %141 = arith.mulf %140, %139 : vector<16x16xf32>
    %142 = arith.maximumf %139, %141 : vector<16x16xf32>
    %cst_49 = arith.constant -1.000000e+30 : f32
    %143 = vector.broadcast %cst_49 : f32 to vector<16x16xf32>
    %144 = arith.select %134, %142, %143 : vector<16x16xi1>, vector<16x16xf32>
    %cst_50 = arith.constant dense<0xFF800000> : vector<16xf32>
    %145 = vector.multi_reduction <maximumf>, %144, %cst_50 [1] : vector<16x16xf32> to vector<16xf32>
    %146 = vector.shape_cast %145 : vector<16xf32> to vector<16x1xf32>
    %147 = vector.broadcast %146 : vector<16x1xf32> to vector<16x16xf32>
    %148 = arith.subf %144, %147 : vector<16x16xf32>
    %149 = math.exp %148 : vector<16x16xf32>
    %cst_51 = arith.constant dense<0.000000e+00> : vector<16xf32>
    %150 = vector.multi_reduction <add>, %149, %cst_51 [1] : vector<16x16xf32> to vector<16xf32>
    %151 = vector.shape_cast %150 : vector<16xf32> to vector<16x1xf32>
    %152 = tpu.reciprocal %151 {approx = true} : vector<16x1xf32> -> vector<16x1xf32>
    %153 = vector.broadcast %152 : vector<16x1xf32> to vector<16x16xf32>
    %154 = arith.mulf %149, %153 : vector<16x16xf32>
    %155 = arith.truncf %154 : vector<16x16xf32> to vector<16x16xbf16>
    %156 = vector.extract_strided_slice %128 {offsets = [0, 0], sizes = [16, 8], strides = [1, 1]} : vector<16x32xbf16> to vector<16x8xbf16>
    %cst_52 = arith.constant dense<0.000000e+00> : vector<16x8xf32>
    %157 = tpu.matmul %155, %156, %cst_52 {dimension_numbers = #tpu.dot_dimension_numbers<[1], [0], [0], [1], [0, 0, 1, 1], [], []>} : vector<16x16xbf16>, vector<16x8xbf16>, vector<16x8xf32> -> vector<16x8xf32>
    %158 = vector.extract_strided_slice %129 {offsets = [0, 1], sizes = [16, 1], strides = [1, 1]} : vector<16x4xf32> to vector<16x1xf32>
    %159 = vector.extract_strided_slice %130 {offsets = [1, 0], sizes = [1, 16], strides = [1, 1]} : vector<4x16xf32> to vector<1x16xf32>
    %160 = vector.broadcast %158 : vector<16x1xf32> to vector<16x16xf32>
    %161 = vector.broadcast %159 : vector<1x16xf32> to vector<16x16xf32>
    %162 = arith.addf %160, %161 : vector<16x16xf32>
    %cst_53 = arith.constant 2.000000e-01 : f32
    %163 = vector.broadcast %cst_53 : f32 to vector<16x16xf32>
    %164 = arith.mulf %163, %162 : vector<16x16xf32>
    %165 = arith.maximumf %162, %164 : vector<16x16xf32>
    %cst_54 = arith.constant -1.000000e+30 : f32
    %166 = vector.broadcast %cst_54 : f32 to vector<16x16xf32>
    %167 = arith.select %134, %165, %166 : vector<16x16xi1>, vector<16x16xf32>
    %cst_55 = arith.constant dense<0xFF800000> : vector<16xf32>
    %168 = vector.multi_reduction <maximumf>, %167, %cst_55 [1] : vector<16x16xf32> to vector<16xf32>
    %169 = vector.shape_cast %168 : vector<16xf32> to vector<16x1xf32>
    %170 = vector.broadcast %169 : vector<16x1xf32> to vector<16x16xf32>
    %171 = arith.subf %167, %170 : vector<16x16xf32>
    %172 = math.exp %171 : vector<16x16xf32>
    %cst_56 = arith.constant dense<0.000000e+00> : vector<16xf32>
    %173 = vector.multi_reduction <add>, %172, %cst_56 [1] : vector<16x16xf32> to vector<16xf32>
    %174 = vector.shape_cast %173 : vector<16xf32> to vector<16x1xf32>
    %175 = tpu.reciprocal %174 {approx = true} : vector<16x1xf32> -> vector<16x1xf32>
    %176 = vector.broadcast %175 : vector<16x1xf32> to vector<16x16xf32>
    %177 = arith.mulf %172, %176 : vector<16x16xf32>
    %178 = arith.truncf %177 : vector<16x16xf32> to vector<16x16xbf16>
    %179 = vector.extract_strided_slice %128 {offsets = [0, 8], sizes = [16, 8], strides = [1, 1]} : vector<16x32xbf16> to vector<16x8xbf16>
    %cst_57 = arith.constant dense<0.000000e+00> : vector<16x8xf32>
    %180 = tpu.matmul %178, %179, %cst_57 {dimension_numbers = #tpu.dot_dimension_numbers<[1], [0], [0], [1], [0, 0, 1, 1], [], []>} : vector<16x16xbf16>, vector<16x8xbf16>, vector<16x8xf32> -> vector<16x8xf32>
    %181 = vector.extract_strided_slice %129 {offsets = [0, 2], sizes = [16, 1], strides = [1, 1]} : vector<16x4xf32> to vector<16x1xf32>
    %182 = vector.extract_strided_slice %130 {offsets = [2, 0], sizes = [1, 16], strides = [1, 1]} : vector<4x16xf32> to vector<1x16xf32>
    %183 = vector.broadcast %181 : vector<16x1xf32> to vector<16x16xf32>
    %184 = vector.broadcast %182 : vector<1x16xf32> to vector<16x16xf32>
    %185 = arith.addf %183, %184 : vector<16x16xf32>
    %cst_58 = arith.constant 2.000000e-01 : f32
    %186 = vector.broadcast %cst_58 : f32 to vector<16x16xf32>
    %187 = arith.mulf %186, %185 : vector<16x16xf32>
    %188 = arith.maximumf %185, %187 : vector<16x16xf32>
    %cst_59 = arith.constant -1.000000e+30 : f32
    %189 = vector.broadcast %cst_59 : f32 to vector<16x16xf32>
    %190 = arith.select %134, %188, %189 : vector<16x16xi1>, vector<16x16xf32>
    %cst_60 = arith.constant dense<0xFF800000> : vector<16xf32>
    %191 = vector.multi_reduction <maximumf>, %190, %cst_60 [1] : vector<16x16xf32> to vector<16xf32>
    %192 = vector.shape_cast %191 : vector<16xf32> to vector<16x1xf32>
    %193 = vector.broadcast %192 : vector<16x1xf32> to vector<16x16xf32>
    %194 = arith.subf %190, %193 : vector<16x16xf32>
    %195 = math.exp %194 : vector<16x16xf32>
    %cst_61 = arith.constant dense<0.000000e+00> : vector<16xf32>
    %196 = vector.multi_reduction <add>, %195, %cst_61 [1] : vector<16x16xf32> to vector<16xf32>
    %197 = vector.shape_cast %196 : vector<16xf32> to vector<16x1xf32>
    %198 = tpu.reciprocal %197 {approx = true} : vector<16x1xf32> -> vector<16x1xf32>
    %199 = vector.broadcast %198 : vector<16x1xf32> to vector<16x16xf32>
    %200 = arith.mulf %195, %199 : vector<16x16xf32>
    %201 = arith.truncf %200 : vector<16x16xf32> to vector<16x16xbf16>
    %202 = vector.extract_strided_slice %128 {offsets = [0, 16], sizes = [16, 8], strides = [1, 1]} : vector<16x32xbf16> to vector<16x8xbf16>
    %cst_62 = arith.constant dense<0.000000e+00> : vector<16x8xf32>
    %203 = tpu.matmul %201, %202, %cst_62 {dimension_numbers = #tpu.dot_dimension_numbers<[1], [0], [0], [1], [0, 0, 1, 1], [], []>} : vector<16x16xbf16>, vector<16x8xbf16>, vector<16x8xf32> -> vector<16x8xf32>
    %204 = vector.extract_strided_slice %129 {offsets = [0, 3], sizes = [16, 1], strides = [1, 1]} : vector<16x4xf32> to vector<16x1xf32>
    %205 = vector.extract_strided_slice %130 {offsets = [3, 0], sizes = [1, 16], strides = [1, 1]} : vector<4x16xf32> to vector<1x16xf32>
    %206 = vector.broadcast %204 : vector<16x1xf32> to vector<16x16xf32>
    %207 = vector.broadcast %205 : vector<1x16xf32> to vector<16x16xf32>
    %208 = arith.addf %206, %207 : vector<16x16xf32>
    %cst_63 = arith.constant 2.000000e-01 : f32
    %209 = vector.broadcast %cst_63 : f32 to vector<16x16xf32>
    %210 = arith.mulf %209, %208 : vector<16x16xf32>
    %211 = arith.maximumf %208, %210 : vector<16x16xf32>
    %cst_64 = arith.constant -1.000000e+30 : f32
    %212 = vector.broadcast %cst_64 : f32 to vector<16x16xf32>
    %213 = arith.select %134, %211, %212 : vector<16x16xi1>, vector<16x16xf32>
    %cst_65 = arith.constant dense<0xFF800000> : vector<16xf32>
    %214 = vector.multi_reduction <maximumf>, %213, %cst_65 [1] : vector<16x16xf32> to vector<16xf32>
    %215 = vector.shape_cast %214 : vector<16xf32> to vector<16x1xf32>
    %216 = vector.broadcast %215 : vector<16x1xf32> to vector<16x16xf32>
    %217 = arith.subf %213, %216 : vector<16x16xf32>
    %218 = math.exp %217 : vector<16x16xf32>
    %cst_66 = arith.constant dense<0.000000e+00> : vector<16xf32>
    %219 = vector.multi_reduction <add>, %218, %cst_66 [1] : vector<16x16xf32> to vector<16xf32>
    %220 = vector.shape_cast %219 : vector<16xf32> to vector<16x1xf32>
    %221 = tpu.reciprocal %220 {approx = true} : vector<16x1xf32> -> vector<16x1xf32>
    %222 = vector.broadcast %221 : vector<16x1xf32> to vector<16x16xf32>
    %223 = arith.mulf %218, %222 : vector<16x16xf32>
    %224 = arith.truncf %223 : vector<16x16xf32> to vector<16x16xbf16>
    %225 = vector.extract_strided_slice %128 {offsets = [0, 24], sizes = [16, 8], strides = [1, 1]} : vector<16x32xbf16> to vector<16x8xbf16>
    %cst_67 = arith.constant dense<0.000000e+00> : vector<16x8xf32>
    %226 = tpu.matmul %224, %225, %cst_67 {dimension_numbers = #tpu.dot_dimension_numbers<[1], [0], [0], [1], [0, 0, 1, 1], [], []>} : vector<16x16xbf16>, vector<16x8xbf16>, vector<16x8xf32> -> vector<16x8xf32>
    %227 = tpu.concatenate %157, %180, %203, %226 in 1 : vector<16x8xf32>, vector<16x8xf32>, vector<16x8xf32>, vector<16x8xf32> -> vector<16x32xf32>
    %228 = vector.broadcast %125 : vector<1x32xf32> to vector<16x32xf32>
    %229 = arith.addf %227, %228 : vector<16x32xf32>
    %cst_68 = arith.constant 0.000000e+00 : f32
    %230 = vector.broadcast %cst_68 : f32 to vector<16x32xf32>
    %231 = arith.cmpf ogt, %229, %230 : vector<16x32xf32>
    %cst_69 = arith.constant 0.000000e+00 : f32
    %232 = vector.broadcast %cst_69 : f32 to vector<16x32xf32>
    %233 = arith.minimumf %229, %232 : vector<16x32xf32>
    %234 = math.exp %233 : vector<16x32xf32>
    %cst_70 = arith.constant 1.000000e+00 : f32
    %235 = vector.broadcast %cst_70 : f32 to vector<16x32xf32>
    %236 = arith.subf %234, %235 : vector<16x32xf32>
    %237 = arith.select %231, %229, %236 : vector<16x32xi1>, vector<16x32xf32>
    %238 = arith.truncf %237 : vector<16x32xf32> to vector<16x32xbf16>
    %c1_71 = arith.constant 1 : index
    %c0_72 = arith.constant 0 : index
    %c0_73 = arith.constant 0 : index
    %239 = vector.load %arg3[%c1_71, %c0_72, %c0_73] : memref<3x32x36xbf16, #tpu.memory_space<vmem>>, vector<1x32x36xbf16>
    %240 = vector.shape_cast %239 : vector<1x32x36xbf16> to vector<32x36xbf16>
    %c2 = arith.constant 2 : index
    %c0_74 = arith.constant 0 : index
    %c0_75 = arith.constant 0 : index
    %241 = vector.load %arg4[%c2, %c0_74, %c0_75] : memref<4x4x32xbf16, #tpu.memory_space<vmem>>, vector<1x4x32xbf16>
    %242 = vector.shape_cast %241 : vector<1x4x32xbf16> to vector<4x32xbf16>
    %c2_76 = arith.constant 2 : index
    %c0_77 = arith.constant 0 : index
    %c0_78 = arith.constant 0 : index
    %243 = vector.load %arg5[%c2_76, %c0_77, %c0_78] : memref<4x1x32xf32, #tpu.memory_space<vmem>>, vector<1x1x32xf32>
    %244 = vector.shape_cast %243 : vector<1x1x32xf32> to vector<1x32xf32>
    %cst_79 = arith.constant dense<0.000000e+00> : vector<16x36xf32>
    %245 = tpu.matmul %238, %240, %cst_79 {dimension_numbers = #tpu.dot_dimension_numbers<[1], [0], [0], [1], [0, 0, 1, 1], [], []>} : vector<16x32xbf16>, vector<32x36xbf16>, vector<16x36xf32> -> vector<16x36xf32>
    %246 = vector.extract_strided_slice %245 {offsets = [0, 0], sizes = [16, 32], strides = [1, 1]} : vector<16x36xf32> to vector<16x32xf32>
    %247 = arith.truncf %246 : vector<16x32xf32> to vector<16x32xbf16>
    %248 = vector.extract_strided_slice %245 {offsets = [0, 32], sizes = [16, 4], strides = [1, 1]} : vector<16x36xf32> to vector<16x4xf32>
    %cst_80 = arith.constant dense<0.000000e+00> : vector<4x16xf32>
    %249 = tpu.matmul %242, %247, %cst_80 {dimension_numbers = #tpu.dot_dimension_numbers<[1], [1], [0], [0], [0, 0, 1, 0], [], []>} : vector<4x32xbf16>, vector<16x32xbf16>, vector<4x16xf32> -> vector<4x16xf32>
    %c0_81 = arith.constant 0 : index
    %c0_82 = arith.constant 0 : index
    %250 = vector.load %arg1[%c0_81, %c0_82] : memref<16x16xi8, #tpu.memory_space<vmem>>, vector<16x16xi8>
    %251 = arith.extsi %250 : vector<16x16xi8> to vector<16x16xi32>
    %c0_i32_83 = arith.constant 0 : i32
    %252 = vector.broadcast %c0_i32_83 : i32 to vector<16x16xi32>
    %253 = arith.cmpi ne, %251, %252 : vector<16x16xi32>
    %254 = vector.extract_strided_slice %248 {offsets = [0, 0], sizes = [16, 1], strides = [1, 1]} : vector<16x4xf32> to vector<16x1xf32>
    %255 = vector.extract_strided_slice %249 {offsets = [0, 0], sizes = [1, 16], strides = [1, 1]} : vector<4x16xf32> to vector<1x16xf32>
    %256 = vector.broadcast %254 : vector<16x1xf32> to vector<16x16xf32>
    %257 = vector.broadcast %255 : vector<1x16xf32> to vector<16x16xf32>
    %258 = arith.addf %256, %257 : vector<16x16xf32>
    %cst_84 = arith.constant 2.000000e-01 : f32
    %259 = vector.broadcast %cst_84 : f32 to vector<16x16xf32>
    %260 = arith.mulf %259, %258 : vector<16x16xf32>
    %261 = arith.maximumf %258, %260 : vector<16x16xf32>
    %cst_85 = arith.constant -1.000000e+30 : f32
    %262 = vector.broadcast %cst_85 : f32 to vector<16x16xf32>
    %263 = arith.select %253, %261, %262 : vector<16x16xi1>, vector<16x16xf32>
    %cst_86 = arith.constant dense<0xFF800000> : vector<16xf32>
    %264 = vector.multi_reduction <maximumf>, %263, %cst_86 [1] : vector<16x16xf32> to vector<16xf32>
    %265 = vector.shape_cast %264 : vector<16xf32> to vector<16x1xf32>
    %266 = vector.broadcast %265 : vector<16x1xf32> to vector<16x16xf32>
    %267 = arith.subf %263, %266 : vector<16x16xf32>
    %268 = math.exp %267 : vector<16x16xf32>
    %cst_87 = arith.constant dense<0.000000e+00> : vector<16xf32>
    %269 = vector.multi_reduction <add>, %268, %cst_87 [1] : vector<16x16xf32> to vector<16xf32>
    %270 = vector.shape_cast %269 : vector<16xf32> to vector<16x1xf32>
    %271 = tpu.reciprocal %270 {approx = true} : vector<16x1xf32> -> vector<16x1xf32>
    %272 = vector.broadcast %271 : vector<16x1xf32> to vector<16x16xf32>
    %273 = arith.mulf %268, %272 : vector<16x16xf32>
    %274 = arith.truncf %273 : vector<16x16xf32> to vector<16x16xbf16>
    %275 = vector.extract_strided_slice %247 {offsets = [0, 0], sizes = [16, 8], strides = [1, 1]} : vector<16x32xbf16> to vector<16x8xbf16>
    %cst_88 = arith.constant dense<0.000000e+00> : vector<16x8xf32>
    %276 = tpu.matmul %274, %275, %cst_88 {dimension_numbers = #tpu.dot_dimension_numbers<[1], [0], [0], [1], [0, 0, 1, 1], [], []>} : vector<16x16xbf16>, vector<16x8xbf16>, vector<16x8xf32> -> vector<16x8xf32>
    %277 = vector.extract_strided_slice %248 {offsets = [0, 1], sizes = [16, 1], strides = [1, 1]} : vector<16x4xf32> to vector<16x1xf32>
    %278 = vector.extract_strided_slice %249 {offsets = [1, 0], sizes = [1, 16], strides = [1, 1]} : vector<4x16xf32> to vector<1x16xf32>
    %279 = vector.broadcast %277 : vector<16x1xf32> to vector<16x16xf32>
    %280 = vector.broadcast %278 : vector<1x16xf32> to vector<16x16xf32>
    %281 = arith.addf %279, %280 : vector<16x16xf32>
    %cst_89 = arith.constant 2.000000e-01 : f32
    %282 = vector.broadcast %cst_89 : f32 to vector<16x16xf32>
    %283 = arith.mulf %282, %281 : vector<16x16xf32>
    %284 = arith.maximumf %281, %283 : vector<16x16xf32>
    %cst_90 = arith.constant -1.000000e+30 : f32
    %285 = vector.broadcast %cst_90 : f32 to vector<16x16xf32>
    %286 = arith.select %253, %284, %285 : vector<16x16xi1>, vector<16x16xf32>
    %cst_91 = arith.constant dense<0xFF800000> : vector<16xf32>
    %287 = vector.multi_reduction <maximumf>, %286, %cst_91 [1] : vector<16x16xf32> to vector<16xf32>
    %288 = vector.shape_cast %287 : vector<16xf32> to vector<16x1xf32>
    %289 = vector.broadcast %288 : vector<16x1xf32> to vector<16x16xf32>
    %290 = arith.subf %286, %289 : vector<16x16xf32>
    %291 = math.exp %290 : vector<16x16xf32>
    %cst_92 = arith.constant dense<0.000000e+00> : vector<16xf32>
    %292 = vector.multi_reduction <add>, %291, %cst_92 [1] : vector<16x16xf32> to vector<16xf32>
    %293 = vector.shape_cast %292 : vector<16xf32> to vector<16x1xf32>
    %294 = tpu.reciprocal %293 {approx = true} : vector<16x1xf32> -> vector<16x1xf32>
    %295 = vector.broadcast %294 : vector<16x1xf32> to vector<16x16xf32>
    %296 = arith.mulf %291, %295 : vector<16x16xf32>
    %297 = arith.truncf %296 : vector<16x16xf32> to vector<16x16xbf16>
    %298 = vector.extract_strided_slice %247 {offsets = [0, 8], sizes = [16, 8], strides = [1, 1]} : vector<16x32xbf16> to vector<16x8xbf16>
    %cst_93 = arith.constant dense<0.000000e+00> : vector<16x8xf32>
    %299 = tpu.matmul %297, %298, %cst_93 {dimension_numbers = #tpu.dot_dimension_numbers<[1], [0], [0], [1], [0, 0, 1, 1], [], []>} : vector<16x16xbf16>, vector<16x8xbf16>, vector<16x8xf32> -> vector<16x8xf32>
    %300 = vector.extract_strided_slice %248 {offsets = [0, 2], sizes = [16, 1], strides = [1, 1]} : vector<16x4xf32> to vector<16x1xf32>
    %301 = vector.extract_strided_slice %249 {offsets = [2, 0], sizes = [1, 16], strides = [1, 1]} : vector<4x16xf32> to vector<1x16xf32>
    %302 = vector.broadcast %300 : vector<16x1xf32> to vector<16x16xf32>
    %303 = vector.broadcast %301 : vector<1x16xf32> to vector<16x16xf32>
    %304 = arith.addf %302, %303 : vector<16x16xf32>
    %cst_94 = arith.constant 2.000000e-01 : f32
    %305 = vector.broadcast %cst_94 : f32 to vector<16x16xf32>
    %306 = arith.mulf %305, %304 : vector<16x16xf32>
    %307 = arith.maximumf %304, %306 : vector<16x16xf32>
    %cst_95 = arith.constant -1.000000e+30 : f32
    %308 = vector.broadcast %cst_95 : f32 to vector<16x16xf32>
    %309 = arith.select %253, %307, %308 : vector<16x16xi1>, vector<16x16xf32>
    %cst_96 = arith.constant dense<0xFF800000> : vector<16xf32>
    %310 = vector.multi_reduction <maximumf>, %309, %cst_96 [1] : vector<16x16xf32> to vector<16xf32>
    %311 = vector.shape_cast %310 : vector<16xf32> to vector<16x1xf32>
    %312 = vector.broadcast %311 : vector<16x1xf32> to vector<16x16xf32>
    %313 = arith.subf %309, %312 : vector<16x16xf32>
    %314 = math.exp %313 : vector<16x16xf32>
    %cst_97 = arith.constant dense<0.000000e+00> : vector<16xf32>
    %315 = vector.multi_reduction <add>, %314, %cst_97 [1] : vector<16x16xf32> to vector<16xf32>
    %316 = vector.shape_cast %315 : vector<16xf32> to vector<16x1xf32>
    %317 = tpu.reciprocal %316 {approx = true} : vector<16x1xf32> -> vector<16x1xf32>
    %318 = vector.broadcast %317 : vector<16x1xf32> to vector<16x16xf32>
    %319 = arith.mulf %314, %318 : vector<16x16xf32>
    %320 = arith.truncf %319 : vector<16x16xf32> to vector<16x16xbf16>
    %321 = vector.extract_strided_slice %247 {offsets = [0, 16], sizes = [16, 8], strides = [1, 1]} : vector<16x32xbf16> to vector<16x8xbf16>
    %cst_98 = arith.constant dense<0.000000e+00> : vector<16x8xf32>
    %322 = tpu.matmul %320, %321, %cst_98 {dimension_numbers = #tpu.dot_dimension_numbers<[1], [0], [0], [1], [0, 0, 1, 1], [], []>} : vector<16x16xbf16>, vector<16x8xbf16>, vector<16x8xf32> -> vector<16x8xf32>
    %323 = vector.extract_strided_slice %248 {offsets = [0, 3], sizes = [16, 1], strides = [1, 1]} : vector<16x4xf32> to vector<16x1xf32>
    %324 = vector.extract_strided_slice %249 {offsets = [3, 0], sizes = [1, 16], strides = [1, 1]} : vector<4x16xf32> to vector<1x16xf32>
    %325 = vector.broadcast %323 : vector<16x1xf32> to vector<16x16xf32>
    %326 = vector.broadcast %324 : vector<1x16xf32> to vector<16x16xf32>
    %327 = arith.addf %325, %326 : vector<16x16xf32>
    %cst_99 = arith.constant 2.000000e-01 : f32
    %328 = vector.broadcast %cst_99 : f32 to vector<16x16xf32>
    %329 = arith.mulf %328, %327 : vector<16x16xf32>
    %330 = arith.maximumf %327, %329 : vector<16x16xf32>
    %cst_100 = arith.constant -1.000000e+30 : f32
    %331 = vector.broadcast %cst_100 : f32 to vector<16x16xf32>
    %332 = arith.select %253, %330, %331 : vector<16x16xi1>, vector<16x16xf32>
    %cst_101 = arith.constant dense<0xFF800000> : vector<16xf32>
    %333 = vector.multi_reduction <maximumf>, %332, %cst_101 [1] : vector<16x16xf32> to vector<16xf32>
    %334 = vector.shape_cast %333 : vector<16xf32> to vector<16x1xf32>
    %335 = vector.broadcast %334 : vector<16x1xf32> to vector<16x16xf32>
    %336 = arith.subf %332, %335 : vector<16x16xf32>
    %337 = math.exp %336 : vector<16x16xf32>
    %cst_102 = arith.constant dense<0.000000e+00> : vector<16xf32>
    %338 = vector.multi_reduction <add>, %337, %cst_102 [1] : vector<16x16xf32> to vector<16xf32>
    %339 = vector.shape_cast %338 : vector<16xf32> to vector<16x1xf32>
    %340 = tpu.reciprocal %339 {approx = true} : vector<16x1xf32> -> vector<16x1xf32>
    %341 = vector.broadcast %340 : vector<16x1xf32> to vector<16x16xf32>
    %342 = arith.mulf %337, %341 : vector<16x16xf32>
    %343 = arith.truncf %342 : vector<16x16xf32> to vector<16x16xbf16>
    %344 = vector.extract_strided_slice %247 {offsets = [0, 24], sizes = [16, 8], strides = [1, 1]} : vector<16x32xbf16> to vector<16x8xbf16>
    %cst_103 = arith.constant dense<0.000000e+00> : vector<16x8xf32>
    %345 = tpu.matmul %343, %344, %cst_103 {dimension_numbers = #tpu.dot_dimension_numbers<[1], [0], [0], [1], [0, 0, 1, 1], [], []>} : vector<16x16xbf16>, vector<16x8xbf16>, vector<16x8xf32> -> vector<16x8xf32>
    %346 = tpu.concatenate %276, %299, %322, %345 in 1 : vector<16x8xf32>, vector<16x8xf32>, vector<16x8xf32>, vector<16x8xf32> -> vector<16x32xf32>
    %347 = vector.broadcast %244 : vector<1x32xf32> to vector<16x32xf32>
    %348 = arith.addf %346, %347 : vector<16x32xf32>
    %cst_104 = arith.constant 0.000000e+00 : f32
    %349 = vector.broadcast %cst_104 : f32 to vector<16x32xf32>
    %350 = arith.cmpf ogt, %348, %349 : vector<16x32xf32>
    %cst_105 = arith.constant 0.000000e+00 : f32
    %351 = vector.broadcast %cst_105 : f32 to vector<16x32xf32>
    %352 = arith.minimumf %348, %351 : vector<16x32xf32>
    %353 = math.exp %352 : vector<16x32xf32>
    %cst_106 = arith.constant 1.000000e+00 : f32
    %354 = vector.broadcast %cst_106 : f32 to vector<16x32xf32>
    %355 = arith.subf %353, %354 : vector<16x32xf32>
    %356 = arith.select %350, %348, %355 : vector<16x32xi1>, vector<16x32xf32>
    %357 = arith.truncf %356 : vector<16x32xf32> to vector<16x32xbf16>
    %c2_107 = arith.constant 2 : index
    %c0_108 = arith.constant 0 : index
    %c0_109 = arith.constant 0 : index
    %358 = vector.load %arg3[%c2_107, %c0_108, %c0_109] : memref<3x32x36xbf16, #tpu.memory_space<vmem>>, vector<1x32x36xbf16>
    %359 = vector.shape_cast %358 : vector<1x32x36xbf16> to vector<32x36xbf16>
    %c3 = arith.constant 3 : index
    %c0_110 = arith.constant 0 : index
    %c0_111 = arith.constant 0 : index
    %360 = vector.load %arg4[%c3, %c0_110, %c0_111] : memref<4x4x32xbf16, #tpu.memory_space<vmem>>, vector<1x4x32xbf16>
    %361 = vector.shape_cast %360 : vector<1x4x32xbf16> to vector<4x32xbf16>
    %c3_112 = arith.constant 3 : index
    %c0_113 = arith.constant 0 : index
    %c0_114 = arith.constant 0 : index
    %362 = vector.load %arg5[%c3_112, %c0_113, %c0_114] : memref<4x1x32xf32, #tpu.memory_space<vmem>>, vector<1x1x32xf32>
    %363 = vector.shape_cast %362 : vector<1x1x32xf32> to vector<1x32xf32>
    %cst_115 = arith.constant dense<0.000000e+00> : vector<16x36xf32>
    %364 = tpu.matmul %357, %359, %cst_115 {dimension_numbers = #tpu.dot_dimension_numbers<[1], [0], [0], [1], [0, 0, 1, 1], [], []>} : vector<16x32xbf16>, vector<32x36xbf16>, vector<16x36xf32> -> vector<16x36xf32>
    %365 = vector.extract_strided_slice %364 {offsets = [0, 0], sizes = [16, 32], strides = [1, 1]} : vector<16x36xf32> to vector<16x32xf32>
    %366 = arith.truncf %365 : vector<16x32xf32> to vector<16x32xbf16>
    %367 = vector.extract_strided_slice %364 {offsets = [0, 32], sizes = [16, 4], strides = [1, 1]} : vector<16x36xf32> to vector<16x4xf32>
    %cst_116 = arith.constant dense<0.000000e+00> : vector<4x16xf32>
    %368 = tpu.matmul %361, %366, %cst_116 {dimension_numbers = #tpu.dot_dimension_numbers<[1], [1], [0], [0], [0, 0, 1, 0], [], []>} : vector<4x32xbf16>, vector<16x32xbf16>, vector<4x16xf32> -> vector<4x16xf32>
    %c0_117 = arith.constant 0 : index
    %c0_118 = arith.constant 0 : index
    %369 = vector.load %arg1[%c0_117, %c0_118] : memref<16x16xi8, #tpu.memory_space<vmem>>, vector<16x16xi8>
    %370 = arith.extsi %369 : vector<16x16xi8> to vector<16x16xi32>
    %c0_i32_119 = arith.constant 0 : i32
    %371 = vector.broadcast %c0_i32_119 : i32 to vector<16x16xi32>
    %372 = arith.cmpi ne, %370, %371 : vector<16x16xi32>
    %373 = vector.extract_strided_slice %367 {offsets = [0, 0], sizes = [16, 1], strides = [1, 1]} : vector<16x4xf32> to vector<16x1xf32>
    %374 = vector.extract_strided_slice %368 {offsets = [0, 0], sizes = [1, 16], strides = [1, 1]} : vector<4x16xf32> to vector<1x16xf32>
    %375 = vector.broadcast %373 : vector<16x1xf32> to vector<16x16xf32>
    %376 = vector.broadcast %374 : vector<1x16xf32> to vector<16x16xf32>
    %377 = arith.addf %375, %376 : vector<16x16xf32>
    %cst_120 = arith.constant 2.000000e-01 : f32
    %378 = vector.broadcast %cst_120 : f32 to vector<16x16xf32>
    %379 = arith.mulf %378, %377 : vector<16x16xf32>
    %380 = arith.maximumf %377, %379 : vector<16x16xf32>
    %cst_121 = arith.constant -1.000000e+30 : f32
    %381 = vector.broadcast %cst_121 : f32 to vector<16x16xf32>
    %382 = arith.select %372, %380, %381 : vector<16x16xi1>, vector<16x16xf32>
    %cst_122 = arith.constant dense<0xFF800000> : vector<16xf32>
    %383 = vector.multi_reduction <maximumf>, %382, %cst_122 [1] : vector<16x16xf32> to vector<16xf32>
    %384 = vector.shape_cast %383 : vector<16xf32> to vector<16x1xf32>
    %385 = vector.broadcast %384 : vector<16x1xf32> to vector<16x16xf32>
    %386 = arith.subf %382, %385 : vector<16x16xf32>
    %387 = math.exp %386 : vector<16x16xf32>
    %cst_123 = arith.constant dense<0.000000e+00> : vector<16xf32>
    %388 = vector.multi_reduction <add>, %387, %cst_123 [1] : vector<16x16xf32> to vector<16xf32>
    %389 = vector.shape_cast %388 : vector<16xf32> to vector<16x1xf32>
    %390 = tpu.reciprocal %389 {approx = true} : vector<16x1xf32> -> vector<16x1xf32>
    %391 = vector.broadcast %390 : vector<16x1xf32> to vector<16x16xf32>
    %392 = arith.mulf %387, %391 : vector<16x16xf32>
    %393 = arith.truncf %392 : vector<16x16xf32> to vector<16x16xbf16>
    %394 = vector.extract_strided_slice %366 {offsets = [0, 0], sizes = [16, 8], strides = [1, 1]} : vector<16x32xbf16> to vector<16x8xbf16>
    %cst_124 = arith.constant dense<0.000000e+00> : vector<16x8xf32>
    %395 = tpu.matmul %393, %394, %cst_124 {dimension_numbers = #tpu.dot_dimension_numbers<[1], [0], [0], [1], [0, 0, 1, 1], [], []>} : vector<16x16xbf16>, vector<16x8xbf16>, vector<16x8xf32> -> vector<16x8xf32>
    %396 = vector.extract_strided_slice %367 {offsets = [0, 1], sizes = [16, 1], strides = [1, 1]} : vector<16x4xf32> to vector<16x1xf32>
    %397 = vector.extract_strided_slice %368 {offsets = [1, 0], sizes = [1, 16], strides = [1, 1]} : vector<4x16xf32> to vector<1x16xf32>
    %398 = vector.broadcast %396 : vector<16x1xf32> to vector<16x16xf32>
    %399 = vector.broadcast %397 : vector<1x16xf32> to vector<16x16xf32>
    %400 = arith.addf %398, %399 : vector<16x16xf32>
    %cst_125 = arith.constant 2.000000e-01 : f32
    %401 = vector.broadcast %cst_125 : f32 to vector<16x16xf32>
    %402 = arith.mulf %401, %400 : vector<16x16xf32>
    %403 = arith.maximumf %400, %402 : vector<16x16xf32>
    %cst_126 = arith.constant -1.000000e+30 : f32
    %404 = vector.broadcast %cst_126 : f32 to vector<16x16xf32>
    %405 = arith.select %372, %403, %404 : vector<16x16xi1>, vector<16x16xf32>
    %cst_127 = arith.constant dense<0xFF800000> : vector<16xf32>
    %406 = vector.multi_reduction <maximumf>, %405, %cst_127 [1] : vector<16x16xf32> to vector<16xf32>
    %407 = vector.shape_cast %406 : vector<16xf32> to vector<16x1xf32>
    %408 = vector.broadcast %407 : vector<16x1xf32> to vector<16x16xf32>
    %409 = arith.subf %405, %408 : vector<16x16xf32>
    %410 = math.exp %409 : vector<16x16xf32>
    %cst_128 = arith.constant dense<0.000000e+00> : vector<16xf32>
    %411 = vector.multi_reduction <add>, %410, %cst_128 [1] : vector<16x16xf32> to vector<16xf32>
    %412 = vector.shape_cast %411 : vector<16xf32> to vector<16x1xf32>
    %413 = tpu.reciprocal %412 {approx = true} : vector<16x1xf32> -> vector<16x1xf32>
    %414 = vector.broadcast %413 : vector<16x1xf32> to vector<16x16xf32>
    %415 = arith.mulf %410, %414 : vector<16x16xf32>
    %416 = arith.truncf %415 : vector<16x16xf32> to vector<16x16xbf16>
    %417 = vector.extract_strided_slice %366 {offsets = [0, 8], sizes = [16, 8], strides = [1, 1]} : vector<16x32xbf16> to vector<16x8xbf16>
    %cst_129 = arith.constant dense<0.000000e+00> : vector<16x8xf32>
    %418 = tpu.matmul %416, %417, %cst_129 {dimension_numbers = #tpu.dot_dimension_numbers<[1], [0], [0], [1], [0, 0, 1, 1], [], []>} : vector<16x16xbf16>, vector<16x8xbf16>, vector<16x8xf32> -> vector<16x8xf32>
    %419 = vector.extract_strided_slice %367 {offsets = [0, 2], sizes = [16, 1], strides = [1, 1]} : vector<16x4xf32> to vector<16x1xf32>
    %420 = vector.extract_strided_slice %368 {offsets = [2, 0], sizes = [1, 16], strides = [1, 1]} : vector<4x16xf32> to vector<1x16xf32>
    %421 = vector.broadcast %419 : vector<16x1xf32> to vector<16x16xf32>
    %422 = vector.broadcast %420 : vector<1x16xf32> to vector<16x16xf32>
    %423 = arith.addf %421, %422 : vector<16x16xf32>
    %cst_130 = arith.constant 2.000000e-01 : f32
    %424 = vector.broadcast %cst_130 : f32 to vector<16x16xf32>
    %425 = arith.mulf %424, %423 : vector<16x16xf32>
    %426 = arith.maximumf %423, %425 : vector<16x16xf32>
    %cst_131 = arith.constant -1.000000e+30 : f32
    %427 = vector.broadcast %cst_131 : f32 to vector<16x16xf32>
    %428 = arith.select %372, %426, %427 : vector<16x16xi1>, vector<16x16xf32>
    %cst_132 = arith.constant dense<0xFF800000> : vector<16xf32>
    %429 = vector.multi_reduction <maximumf>, %428, %cst_132 [1] : vector<16x16xf32> to vector<16xf32>
    %430 = vector.shape_cast %429 : vector<16xf32> to vector<16x1xf32>
    %431 = vector.broadcast %430 : vector<16x1xf32> to vector<16x16xf32>
    %432 = arith.subf %428, %431 : vector<16x16xf32>
    %433 = math.exp %432 : vector<16x16xf32>
    %cst_133 = arith.constant dense<0.000000e+00> : vector<16xf32>
    %434 = vector.multi_reduction <add>, %433, %cst_133 [1] : vector<16x16xf32> to vector<16xf32>
    %435 = vector.shape_cast %434 : vector<16xf32> to vector<16x1xf32>
    %436 = tpu.reciprocal %435 {approx = true} : vector<16x1xf32> -> vector<16x1xf32>
    %437 = vector.broadcast %436 : vector<16x1xf32> to vector<16x16xf32>
    %438 = arith.mulf %433, %437 : vector<16x16xf32>
    %439 = arith.truncf %438 : vector<16x16xf32> to vector<16x16xbf16>
    %440 = vector.extract_strided_slice %366 {offsets = [0, 16], sizes = [16, 8], strides = [1, 1]} : vector<16x32xbf16> to vector<16x8xbf16>
    %cst_134 = arith.constant dense<0.000000e+00> : vector<16x8xf32>
    %441 = tpu.matmul %439, %440, %cst_134 {dimension_numbers = #tpu.dot_dimension_numbers<[1], [0], [0], [1], [0, 0, 1, 1], [], []>} : vector<16x16xbf16>, vector<16x8xbf16>, vector<16x8xf32> -> vector<16x8xf32>
    %442 = vector.extract_strided_slice %367 {offsets = [0, 3], sizes = [16, 1], strides = [1, 1]} : vector<16x4xf32> to vector<16x1xf32>
    %443 = vector.extract_strided_slice %368 {offsets = [3, 0], sizes = [1, 16], strides = [1, 1]} : vector<4x16xf32> to vector<1x16xf32>
    %444 = vector.broadcast %442 : vector<16x1xf32> to vector<16x16xf32>
    %445 = vector.broadcast %443 : vector<1x16xf32> to vector<16x16xf32>
    %446 = arith.addf %444, %445 : vector<16x16xf32>
    %cst_135 = arith.constant 2.000000e-01 : f32
    %447 = vector.broadcast %cst_135 : f32 to vector<16x16xf32>
    %448 = arith.mulf %447, %446 : vector<16x16xf32>
    %449 = arith.maximumf %446, %448 : vector<16x16xf32>
    %cst_136 = arith.constant -1.000000e+30 : f32
    %450 = vector.broadcast %cst_136 : f32 to vector<16x16xf32>
    %451 = arith.select %372, %449, %450 : vector<16x16xi1>, vector<16x16xf32>
    %cst_137 = arith.constant dense<0xFF800000> : vector<16xf32>
    %452 = vector.multi_reduction <maximumf>, %451, %cst_137 [1] : vector<16x16xf32> to vector<16xf32>
    %453 = vector.shape_cast %452 : vector<16xf32> to vector<16x1xf32>
    %454 = vector.broadcast %453 : vector<16x1xf32> to vector<16x16xf32>
    %455 = arith.subf %451, %454 : vector<16x16xf32>
    %456 = math.exp %455 : vector<16x16xf32>
    %cst_138 = arith.constant dense<0.000000e+00> : vector<16xf32>
    %457 = vector.multi_reduction <add>, %456, %cst_138 [1] : vector<16x16xf32> to vector<16xf32>
    %458 = vector.shape_cast %457 : vector<16xf32> to vector<16x1xf32>
    %459 = tpu.reciprocal %458 {approx = true} : vector<16x1xf32> -> vector<16x1xf32>
    %460 = vector.broadcast %459 : vector<16x1xf32> to vector<16x16xf32>
    %461 = arith.mulf %456, %460 : vector<16x16xf32>
    %462 = arith.truncf %461 : vector<16x16xf32> to vector<16x16xbf16>
    %463 = vector.extract_strided_slice %366 {offsets = [0, 24], sizes = [16, 8], strides = [1, 1]} : vector<16x32xbf16> to vector<16x8xbf16>
    %cst_139 = arith.constant dense<0.000000e+00> : vector<16x8xf32>
    %464 = tpu.matmul %462, %463, %cst_139 {dimension_numbers = #tpu.dot_dimension_numbers<[1], [0], [0], [1], [0, 0, 1, 1], [], []>} : vector<16x16xbf16>, vector<16x8xbf16>, vector<16x8xf32> -> vector<16x8xf32>
    %465 = tpu.concatenate %395, %418, %441, %464 in 1 : vector<16x8xf32>, vector<16x8xf32>, vector<16x8xf32>, vector<16x8xf32> -> vector<16x32xf32>
    %466 = vector.broadcast %363 : vector<1x32xf32> to vector<16x32xf32>
    %467 = arith.addf %465, %466 : vector<16x32xf32>
    %cst_140 = arith.constant 0.000000e+00 : f32
    %468 = vector.broadcast %cst_140 : f32 to vector<16x32xf32>
    %469 = arith.cmpf ogt, %467, %468 : vector<16x32xf32>
    %cst_141 = arith.constant 0.000000e+00 : f32
    %470 = vector.broadcast %cst_141 : f32 to vector<16x32xf32>
    %471 = arith.minimumf %467, %470 : vector<16x32xf32>
    %472 = math.exp %471 : vector<16x32xf32>
    %cst_142 = arith.constant 1.000000e+00 : f32
    %473 = vector.broadcast %cst_142 : f32 to vector<16x32xf32>
    %474 = arith.subf %472, %473 : vector<16x32xf32>
    %475 = arith.select %469, %467, %474 : vector<16x32xi1>, vector<16x32xf32>
    %476 = arith.truncf %475 : vector<16x32xf32> to vector<16x32xbf16>
    %c0_143 = arith.constant 0 : index
    %c0_144 = arith.constant 0 : index
    %477 = vector.load %arg6[%c0_143, %c0_144] : memref<2x16xbf16, #tpu.memory_space<vmem>>, vector<2x16xbf16>
    %cst_145 = arith.constant dense<0.000000e+00> : vector<2x32xf32>
    %478 = tpu.matmul %477, %476, %cst_145 {dimension_numbers = #tpu.dot_dimension_numbers<[1], [0], [0], [1], [0, 0, 1, 1], [], []>} : vector<2x16xbf16>, vector<16x32xbf16>, vector<2x32xf32> -> vector<2x32xf32>
    %c0_146 = arith.constant 0 : index
    %c0_147 = arith.constant 0 : index
    %479 = vector.load %arg12[%c0_146, %c0_147] : memref<2x32xf32, #tpu.memory_space<vmem>>, vector<2x32xf32>
    tpu.vector_store %arg12[%c0_146, %c0_147], %478 {strides = array<i32>} : memref<2x32xf32, #tpu.memory_space<vmem>>, vector<2x32xf32>,
    %480 = arith.truncf %478 : vector<2x32xf32> to vector<2x32xbf16>
    %c0_148 = arith.constant 0 : index
    %c0_149 = arith.constant 0 : index
    %481 = vector.load %arg7[%c0_148, %c0_149] : memref<32x32xbf16, #tpu.memory_space<vmem>>, vector<32x32xbf16>
    %cst_150 = arith.constant dense<0.000000e+00> : vector<2x32xf32>
    %482 = tpu.matmul %480, %481, %cst_150 {dimension_numbers = #tpu.dot_dimension_numbers<[1], [0], [0], [1], [0, 0, 1, 1], [], []>} : vector<2x32xbf16>, vector<32x32xbf16>, vector<2x32xf32> -> vector<2x32xf32>
    %c0_151 = arith.constant 0 : index
    %c0_152 = arith.constant 0 : index
    %483 = vector.load %arg8[%c0_151, %c0_152] : memref<1x32xf32, #tpu.memory_space<vmem>>, vector<1x32xf32>
    %484 = vector.broadcast %483 : vector<1x32xf32> to vector<2x32xf32>
    %485 = arith.addf %482, %484 : vector<2x32xf32>
    %cst_153 = arith.constant 0.000000e+00 : f32
    %486 = vector.broadcast %cst_153 : f32 to vector<2x32xf32>
    %487 = arith.maximumf %485, %486 : vector<2x32xf32>
    %488 = arith.truncf %487 : vector<2x32xf32> to vector<2x32xbf16>
    %c0_154 = arith.constant 0 : index
    %c0_155 = arith.constant 0 : index
    %489 = vector.load %arg9[%c0_154, %c0_155] : memref<32x3xbf16, #tpu.memory_space<vmem>>, vector<32x3xbf16>
    %cst_156 = arith.constant dense<0.000000e+00> : vector<2x3xf32>
    %490 = tpu.matmul %488, %489, %cst_156 {dimension_numbers = #tpu.dot_dimension_numbers<[1], [0], [0], [1], [0, 0, 1, 1], [], []>} : vector<2x32xbf16>, vector<32x3xbf16>, vector<2x3xf32> -> vector<2x3xf32>
    %c0_157 = arith.constant 0 : index
    %c0_158 = arith.constant 0 : index
    %491 = vector.load %arg10[%c0_157, %c0_158] : memref<1x3xf32, #tpu.memory_space<vmem>>, vector<1x3xf32>
    %492 = vector.broadcast %491 : vector<1x3xf32> to vector<2x3xf32>
    %493 = arith.addf %490, %492 : vector<2x3xf32>
    %cst_159 = arith.constant dense<0xFF800000> : vector<2xf32>
    %494 = vector.multi_reduction <maximumf>, %493, %cst_159 [1] : vector<2x3xf32> to vector<2xf32>
    %495 = vector.shape_cast %494 : vector<2xf32> to vector<2x1xf32>
    %496 = vector.broadcast %495 : vector<2x1xf32> to vector<2x3xf32>
    %497 = arith.subf %493, %496 : vector<2x3xf32>
    %498 = math.exp %497 : vector<2x3xf32>
    %cst_160 = arith.constant dense<0.000000e+00> : vector<2xf32>
    %499 = vector.multi_reduction <add>, %498, %cst_160 [1] : vector<2x3xf32> to vector<2xf32>
    %500 = vector.shape_cast %499 : vector<2xf32> to vector<2x1xf32>
    %501 = math.log %500 : vector<2x1xf32>
    %502 = vector.broadcast %501 : vector<2x1xf32> to vector<2x3xf32>
    %503 = arith.subf %497, %502 : vector<2x3xf32>
    %c0_161 = arith.constant 0 : index
    %c0_162 = arith.constant 0 : index
    %504 = vector.load %arg11[%c0_161, %c0_162] : memref<2x3xf32, #tpu.memory_space<vmem>>, vector<2x3xf32>
    tpu.vector_store %arg11[%c0_161, %c0_162], %503 {strides = array<i32>} : memref<2x3xf32, #tpu.memory_space<vmem>>, vector<2x3xf32>,
    return
  }
}

</mosaic_0001>

<llo_original>
// kernel: tpu_custom_call.1
$region0: #{tpu_custom_call.1}
  #allocation0 [shape = 'u32[]', space=smem, size = 0x4, offset = 0x4, fixed_abs, tag = 'smem constant byte address 0x4 - core index']
  #allocation1 [shape = 'u32[72,128]{1,0:T(1,128)}', space=vmem, size = 0x9000, scoped, tag = 'internal scratch']
  %s0 = inlined_call_operand.vmem [shape: f32[16,8], index: 0, kind: input, shape index: {}]
  %s1 = inlined_call_operand.vmem [shape: s8[16,16], index: 1, kind: input, shape index: {}]
  %s2 = inlined_call_operand.vmem [shape: bf16[8,36], index: 2, kind: input, shape index: {}]
  %s3 = inlined_call_operand.hbm [shape: bf16[3,32,36], index: 3, kind: input, shape index: {}]
  %s4 = inlined_call_operand.vmem [shape: bf16[4,4,32], index: 4, kind: input, shape index: {}]
  %s5 = inlined_call_operand.vmem [shape: f32[4,1,32], index: 5, kind: input, shape index: {}]
  %s6 = inlined_call_operand.vmem [shape: bf16[2,16], index: 6, kind: input, shape index: {}]
  %s7 = inlined_call_operand.vmem [shape: bf16[32,32], index: 7, kind: input, shape index: {}]
  %s8 = inlined_call_operand.vmem [shape: f32[1,32], index: 8, kind: input, shape index: {}]
  %s9 = inlined_call_operand.vmem [shape: bf16[32,3], index: 9, kind: input, shape index: {}]
  %s10 = inlined_call_operand.vmem [shape: f32[1,3], index: 10, kind: input, shape index: {}]
  %s11 = inlined_call_operand.hbm [shape: f32[2,3], index: 11, kind: output, shape index: {0}]
  %s12 = inlined_call_operand.hbm [shape: f32[2,32], index: 12, kind: output, shape index: {1}]
  %13 = xla_tuple %s11, %s12
  %s14 = sld [smem:[#allocation0]]
  $region66: #{tpu_custom_call.1} parent=0
    _
  %s16 = ssub.s32 1, %s14
  %s17 = scalar_select 0, %s16, %s14
  $region1: #{tpu_custom_call.1} parent=0
    #allocation2 [shape = 'u8[24576]{0}', space=vmem, size = 0x6000, scoped, tag = 'input window, operand 3, single buffered']
    #allocation3 [shape = 's32[1]{0}', space=sflag, size = 0x4, scoped, tag = 'scoped memory for tpu_custom_call.1']
    #allocation4 [shape = 's32[1]{0}', space=sflag, size = 0x4, scoped, tag = 'scoped memory for tpu_custom_call.1']
    #allocation5 [shape = 'u8[1024]{0}', space=vmem, size = 0x400, scoped, tag = 'output window, operand 0, single buffered']
    #allocation6 [shape = 'u8[1024]{0}', space=vmem, size = 0x400, scoped, tag = 'output window, operand 1, single buffered']
    #allocation7 [shape = 's32[1]{0}', space=sflag, size = 0x4, scoped, tag = 'scoped memory for tpu_custom_call.1']
    %18 = vsyncpa [#allocation3], 0
    %19 = vsyncpa [#allocation4], 0
    %20 = vsyncpa [#allocation7], 0
    // Predicated region
    $region2: #{tpu_custom_call.1} parent=1 // pred_check
      _
    $region3: #{tpu_custom_call.1} parent=1 // pred_check_branch
      %22 = sbr.rel (0) target = $region5
    $region4: #{tpu_custom_call.1} parent=1 // pred_region
      _
    $region5: #{tpu_custom_call.1} parent=1 // pred_fallthru
      _
    // Predicated region
    $region6: #{tpu_custom_call.1} parent=1 // pred_check
      _
    $region7: #{tpu_custom_call.1} parent=1 // pred_check_branch
      %24 = sbr.rel (0) target = $region9
    $region8: #{tpu_custom_call.1} parent=1 // pred_region
      _
    $region9: #{tpu_custom_call.1} parent=1 // pred_fallthru
      _
    // Predicated region
    $region10: #{tpu_custom_call.1} parent=1 // pred_check
      _
    $region11: #{tpu_custom_call.1} parent=1 // pred_check_branch
      %26 = sbr.rel (0) target = $region13
    $region12: #{tpu_custom_call.1} parent=1 // pred_region
      _
    $region13: #{tpu_custom_call.1} parent=1 // pred_fallthru
      _
    // Predicated region
    $region14: #{tpu_custom_call.1} parent=1 // pred_check
      _
    $region15: #{tpu_custom_call.1} parent=1 // pred_check_branch
      %28 = sbr.rel (0) target = $region17
    $region16: #{tpu_custom_call.1} parent=1 // pred_region
      %30 = vsyncadd [#allocation3], 0
      %s31 = sshll.u32 %s3, 4
      %s32 = int_to_ptr.hbm [resolvable:$true] %s31
      %s33 = sshll.u32 [#allocation2], 4
      %s34 = int_to_ptr.vmem [resolvable:$true] %s33
      %39 = dma.hbm_to_vmem [thread:$0]  %s32, 768, %s34, [#allocation3], 64, 64, 4
    $region17: #{tpu_custom_call.1} parent=1 // pred_fallthru
      _
    // Predicated region
    $region18: #{tpu_custom_call.1} parent=1 // pred_check
      _
    $region19: #{tpu_custom_call.1} parent=1 // pred_check_branch
      %41 = sbr.rel (0) target = $region21
    $region20: #{tpu_custom_call.1} parent=1 // pred_region
      _
    $region21: #{tpu_custom_call.1} parent=1 // pred_fallthru
      _
    // Predicated region
    $region22: #{tpu_custom_call.1} parent=1 // pred_check
      _
    $region23: #{tpu_custom_call.1} parent=1 // pred_check_branch
      %43 = sbr.rel (0) target = $region25
    $region24: #{tpu_custom_call.1} parent=1 // pred_region
      _
    $region25: #{tpu_custom_call.1} parent=1 // pred_fallthru
      _
    // Predicated region
    $region26: #{tpu_custom_call.1} parent=1 // pred_check
      _
    $region27: #{tpu_custom_call.1} parent=1 // pred_check_branch
      %45 = sbr.rel (0) target = $region29
    $region28: #{tpu_custom_call.1} parent=1 // pred_region
      _
    $region29: #{tpu_custom_call.1} parent=1 // pred_fallthru
      _
    // Predicated region
    $region30: #{tpu_custom_call.1} parent=1 // pred_check
      _
    $region31: #{tpu_custom_call.1} parent=1 // pred_check_branch
      %47 = sbr.rel (0) target = $region33
    $region32: #{tpu_custom_call.1} parent=1 // pred_region
      _
    $region33: #{tpu_custom_call.1} parent=1 // pred_fallthru
      _
    // Predicated region
    $region34: #{tpu_custom_call.1} parent=1 // pred_check
      _
    $region35: #{tpu_custom_call.1} parent=1 // pred_check_branch
      %49 = sbr.rel (0) target = $region37
    $region36: #{tpu_custom_call.1} parent=1 // pred_region
      _
    $region37: #{tpu_custom_call.1} parent=1 // pred_fallthru
      _
    // Predicated region
    $region38: #{tpu_custom_call.1} parent=1 // pred_check
      _
    $region39: #{tpu_custom_call.1} parent=1 // pred_check_branch
      %51 = sbr.rel (0) target = $region41
    $region40: #{tpu_custom_call.1} parent=1 // pred_region
      _
    $region41: #{tpu_custom_call.1} parent=1 // pred_fallthru
      _
    // Predicated region
    $region42: #{tpu_custom_call.1} parent=1 // pred_check
      _
    $region43: #{tpu_custom_call.1} parent=1 // pred_check_branch
      %53 = sbr.rel (0) target = $region45
    $region44: #{tpu_custom_call.1} parent=1 // pred_region
      _
    $region45: #{tpu_custom_call.1} parent=1 // pred_fallthru
      _
    // Predicated region
    $region46: #{tpu_custom_call.1} parent=1 // pred_check
      _
    $region47: #{tpu_custom_call.1} parent=1 // pred_check_branch
      %55 = sbr.rel (0) target = $region49
    $region48: #{tpu_custom_call.1} parent=1 // pred_region
      %57 = dma.done [#allocation3], 768
    $region49: #{tpu_custom_call.1} parent=1 // pred_fallthru
      _
    %v59 = vld [vmem:[%s0] sm:$0xff]
    %v60 = vld [vmem:[%s0 + $0x8] sm:$0xff]
    %v61 = vpack.c.bf16 %v60, %v59
    %v62 = vld [vmem:[%s2] sm:$0xf]
    %v63 = vld [vmem:[%s4] sm:$0x3]
    %v64 = vld [vmem:[%s5] sm:$0x1]
    %vm65 = vcmask 64512
    %v67 = vsel %vm65, %v61, 0
    %vm69 = vcmask 1043456
    %v71 = vsel %vm69, %v62, 0
    %73 = vmatpush.bf16.msra.mxu0 0
    %74 = vmatpush.bf16.msra.mxu0 0
    %75 = vmatpush.bf16.msra.mxu0 0
    %76 = vmatpush.bf16.msra.mxu0 0
    %77 = vmatpush.bf16.msra.mxu0 0
    %78 = vmatpush.bf16.msra.mxu0 0
    %79 = vmatpush.bf16.msra.mxu0 0
    %80 = vmatpush.bf16.msra.mxu0 %v71
    %81 = vmatmul.bf16.gmra.mxu0 %v67
    %v82 = vpop.f32.mrf.mxu0
    %v83 = vadd.f32 0.0, %v82
    %v84 = vpop.f32.mrf.mxu0
    %v85 = vadd.f32 0.0, %v84
    %86 = vdwg.mxu0
    %v87 = vpack.c.bf16 %v83, %v83
    %v88 = vpack.c.bf16 %v85, %v85
    %v91 = vunpack.c.l.b16 %v87
    %v92 = vunpack.c.l.b16 %v88
    %v93 = vpack.c.b16 %v92, %v91
    %vm94 = vcmask 261120
    %v96 = vsel %vm94, %v63, 0
    %v99 = vsel %vm94, %v93, 0
    %101 = vmatpush.bf16.xpose.msra.mxu0 0
    %102 = vmatpush.bf16.xpose.msra.mxu0 0
    %103 = vmatpush.bf16.xpose.msra.mxu0 0
    %104 = vmatpush.bf16.xpose.msra.mxu0 0
    %105 = vmatpush.bf16.xpose.msra.mxu0 0
    %106 = vmatpush.bf16.xpose.msra.mxu0 0
    %107 = vmatpush.bf16.xpose.msra.mxu0 0
    %108 = vmatpush.bf16.xpose.msra.mxu0 %v99
    %109 = vmatmul.bf16.gmra.mxu0 %v96
    %v110 = vpop.f32.mrf.mxu0
    %v111 = vadd.f32 0.0, %v110
    %v112 = vpop.f32.mrf.mxu0
    %113 = vdwg.mxu0
    %v114 = vld [vmem:[%s1] sm:$0x3]
    %v115 = vld [vmem:[%s1 + $0x2] sm:$0x3]
    %v116 = vunpack.c.0.s8 %v114
    %v117 = vunpack.c.0.s8 %v115
    %vm118 = vcmp.ne.s32.totalorder %v116, 0
    %vm119 = vcmp.ne.s32.totalorder %v117, 0
    %121 = vset.pattern.permute.xlu0 32
    %122 = vperm.xlu0 %121, %v83
    %v123 = vpop.permute.xlu0 %122
    %126 = vset.pattern.permute.xlu0 32
    %127 = vperm.xlu0 %126, %v85
    %v128 = vpop.permute.xlu0 %127
    %v130 = vperm.slane %v111, 0
    %v131 = vadd.f32 %v123, %v130
    %v132 = vadd.f32 %v128, %v130
    %v133 = vmul.f32 %v131, 0.2
    %v134 = vmul.f32 %v132, 0.2
    %v135 = vmax.f32 %v131, %v133
    %v136 = vmax.f32 %v132, %v134
    %v137 = vsel %vm118, %v135, -1e+30
    %v138 = vsel %vm119, %v136, -1e+30
    %vm139 = vcmask 130048
    %v140 = vsel %vm139, %v137, -inf
    %141 = vmax.xlane.f32.xlu0 %v140
    %v142 = vpop.xlane.xlu0 %141
    %v143 = vsel %vm139, %v138, -inf
    %144 = vmax.xlane.f32.xlu0 %v143
    %v145 = vpop.xlane.xlu0 %144
    %v146 = vsub.f32 %v137, %v142
    %v147 = vsub.f32 %v138, %v145
    %v148 = vmul.f32 %v146, 1.442695
    %v149 = vpow.pop %v148
    %v150 = vmul.f32 %v147, 1.442695
    %v151 = vpow.pop %v150
    %v152 = vsel %vm139, %v149, 0.0
    %153 = vadd.xlane.f32.xlu0 %v152
    %v154 = vpop.xlane.xlu0 %153
    %v155 = vsel %vm139, %v151, 0.0
    %156 = vadd.xlane.f32.xlu0 %v155
    %v157 = vpop.xlane.xlu0 %156
    %v158 = vrcp.pop %v154
    %v159 = vrcp.pop %v157
    %v160 = vmul.f32 %v149, %v158
    %v161 = vmul.f32 %v151, %v159
    %v162 = vpack.c.bf16 %v161, %v160
    %v165 = vsel %vm139, %v162, 0
    %167 = vmatpush.bf16.msra.mxu0 0
    %168 = vmatpush.bf16.msra.mxu0 0
    %169 = vmatpush.bf16.msra.mxu0 0
    %170 = vmatpush.bf16.msra.mxu0 0
    %171 = vmatpush.bf16.msra.mxu0 0
    %172 = vmatpush.bf16.msra.mxu0 0
    %173 = vmatpush.bf16.msra.mxu0 0
    %174 = vmatpush.bf16.msra.mxu0 %v93
    %175 = vmatmul.bf16.gmra.mxu0 %v165
    %v176 = vpop.f32.mrf.mxu0
    %v177 = vadd.f32 0.0, %v176
    %v178 = vpop.f32.mrf.mxu0
    %v179 = vadd.f32 0.0, %v178
    %180 = vdwg.mxu0
    %181 = vset.pattern.permute.xlu0 33
    %182 = vperm.xlu0 %181, %v83
    %v183 = vpop.permute.xlu0 %182
    %185 = vset.pattern.permute.xlu0 33
    %186 = vperm.xlu0 %185, %v85
    %v187 = vpop.permute.xlu0 %186
    %v189 = vperm.slane %v111, 1
    %v190 = vadd.f32 %v183, %v189
    %v191 = vadd.f32 %v187, %v189
    %v192 = vmul.f32 %v190, 0.2
    %v193 = vmul.f32 %v191, 0.2
    %v194 = vmax.f32 %v190, %v192
    %v195 = vmax.f32 %v191, %v193
    %v196 = vsel %vm118, %v194, -1e+30
    %v197 = vsel %vm119, %v195, -1e+30
    %v198 = vsel %vm139, %v196, -inf
    %199 = vmax.xlane.f32.xlu0 %v198
    %v200 = vpop.xlane.xlu0 %199
    %v201 = vsel %vm139, %v197, -inf
    %202 = vmax.xlane.f32.xlu0 %v201
    %v203 = vpop.xlane.xlu0 %202
    %v204 = vsub.f32 %v196, %v200
    %v205 = vsub.f32 %v197, %v203
    %v206 = vmul.f32 %v204, 1.442695
    %v207 = vpow.pop %v206
    %v208 = vmul.f32 %v205, 1.442695
    %v209 = vpow.pop %v208
    %v210 = vsel %vm139, %v207, 0.0
    %211 = vadd.xlane.f32.xlu0 %v210
    %v212 = vpop.xlane.xlu0 %211
    %v213 = vsel %vm139, %v209, 0.0
    %214 = vadd.xlane.f32.xlu0 %v213
    %v215 = vpop.xlane.xlu0 %214
    %v216 = vrcp.pop %v212
    %v217 = vrcp.pop %v215
    %v218 = vmul.f32 %v207, %v216
    %v219 = vmul.f32 %v209, %v217
    %v220 = vpack.c.bf16 %v219, %v218
    %221 = vrot.lane.b32.xlu0 %v93, 120
    %v222 = vpop.permute.xlu0 %221
    %v225 = vsel %vm139, %v220, 0
    %227 = vmatpush.bf16.msra.mxu0 0
    %228 = vmatpush.bf16.msra.mxu0 0
    %229 = vmatpush.bf16.msra.mxu0 0
    %230 = vmatpush.bf16.msra.mxu0 0
    %231 = vmatpush.bf16.msra.mxu0 0
    %232 = vmatpush.bf16.msra.mxu0 0
    %233 = vmatpush.bf16.msra.mxu0 0
    %234 = vmatpush.bf16.msra.mxu0 %v222
    %235 = vmatmul.bf16.gmra.mxu0 %v225
    %v236 = vpop.f32.mrf.mxu0
    %v237 = vadd.f32 0.0, %v236
    %v238 = vpop.f32.mrf.mxu0
    %v239 = vadd.f32 0.0, %v238
    %240 = vdwg.mxu0
    %241 = vset.pattern.permute.xlu0 34
    %242 = vperm.xlu0 %241, %v83
    %v243 = vpop.permute.xlu0 %242
    %245 = vset.pattern.permute.xlu0 34
    %246 = vperm.xlu0 %245, %v85
    %v247 = vpop.permute.xlu0 %246
    %v249 = vperm.slane %v111, 2
    %v250 = vadd.f32 %v243, %v249
    %v251 = vadd.f32 %v247, %v249
    %v252 = vmul.f32 %v250, 0.2
    %v253 = vmul.f32 %v251, 0.2
    %v254 = vmax.f32 %v250, %v252
    %v255 = vmax.f32 %v251, %v253
    %v256 = vsel %vm118, %v254, -1e+30
    %v257 = vsel %vm119, %v255, -1e+30
    %v258 = vsel %vm139, %v256, -inf
    %259 = vmax.xlane.f32.xlu0 %v258
    %v260 = vpop.xlane.xlu0 %259
    %v261 = vsel %vm139, %v257, -inf
    %262 = vmax.xlane.f32.xlu0 %v261
    %v263 = vpop.xlane.xlu0 %262
    %v264 = vsub.f32 %v256, %v260
    %v265 = vsub.f32 %v257, %v263
    %v266 = vmul.f32 %v264, 1.442695
    %v267 = vpow.pop %v266
    %v268 = vmul.f32 %v265, 1.442695
    %v269 = vpow.pop %v268
    %v270 = vsel %vm139, %v267, 0.0
    %271 = vadd.xlane.f32.xlu0 %v270
    %v272 = vpop.xlane.xlu0 %271
    %v273 = vsel %vm139, %v269, 0.0
    %274 = vadd.xlane.f32.xlu0 %v273
    %v275 = vpop.xlane.xlu0 %274
    %v276 = vrcp.pop %v272
    %v277 = vrcp.pop %v275
    %v278 = vmul.f32 %v267, %v276
    %v279 = vmul.f32 %v269, %v277
    %v280 = vpack.c.bf16 %v279, %v278
    %281 = vrot.lane.b32.xlu0 %v93, 112
    %v282 = vpop.permute.xlu0 %281
    %v285 = vsel %vm139, %v280, 0
    %287 = vmatpush.bf16.msra.mxu0 0
    %288 = vmatpush.bf16.msra.mxu0 0
    %289 = vmatpush.bf16.msra.mxu0 0
    %290 = vmatpush.bf16.msra.mxu0 0
    %291 = vmatpush.bf16.msra.mxu0 0
    %292 = vmatpush.bf16.msra.mxu0 0
    %293 = vmatpush.bf16.msra.mxu0 0
    %294 = vmatpush.bf16.msra.mxu0 %v282
    %295 = vmatmul.bf16.gmra.mxu0 %v285
    %v296 = vpop.f32.mrf.mxu0
    %v297 = vadd.f32 0.0, %v296
    %v298 = vpop.f32.mrf.mxu0
    %v299 = vadd.f32 0.0, %v298
    %300 = vdwg.mxu0
    %301 = vset.pattern.permute.xlu0 35
    %302 = vperm.xlu0 %301, %v83
    %v303 = vpop.permute.xlu0 %302
    %305 = vset.pattern.permute.xlu0 35
    %306 = vperm.xlu0 %305, %v85
    %v307 = vpop.permute.xlu0 %306
    %v309 = vperm.slane %v111, 3
    %v310 = vadd.f32 %v303, %v309
    %v311 = vadd.f32 %v307, %v309
    %v312 = vmul.f32 %v310, 0.2
    %v313 = vmul.f32 %v311, 0.2
    %v314 = vmax.f32 %v310, %v312
    %v315 = vmax.f32 %v311, %v313
    %v316 = vsel %vm118, %v314, -1e+30
    %v317 = vsel %vm119, %v315, -1e+30
    %v318 = vsel %vm139, %v316, -inf
    %319 = vmax.xlane.f32.xlu0 %v318
    %v320 = vpop.xlane.xlu0 %319
    %v321 = vsel %vm139, %v317, -inf
    %322 = vmax.xlane.f32.xlu0 %v321
    %v323 = vpop.xlane.xlu0 %322
    %v324 = vsub.f32 %v316, %v320
    %v325 = vsub.f32 %v317, %v323
    %v326 = vmul.f32 %v324, 1.442695
    %v327 = vpow.pop %v326
    %v328 = vmul.f32 %v325, 1.442695
    %v329 = vpow.pop %v328
    %v330 = vsel %vm139, %v327, 0.0
    %331 = vadd.xlane.f32.xlu0 %v330
    %v332 = vpop.xlane.xlu0 %331
    %v333 = vsel %vm139, %v329, 0.0
    %334 = vadd.xlane.f32.xlu0 %v333
    %v335 = vpop.xlane.xlu0 %334
    %v336 = vrcp.pop %v332
    %v337 = vrcp.pop %v335
    %v338 = vmul.f32 %v327, %v336
    %v339 = vmul.f32 %v329, %v337
    %v340 = vpack.c.bf16 %v339, %v338
    %341 = vrot.lane.b32.xlu0 %v93, 104
    %v342 = vpop.permute.xlu0 %341
    %v345 = vsel %vm139, %v340, 0
    %347 = vmatpush.bf16.msra.mxu0 0
    %348 = vmatpush.bf16.msra.mxu0 0
    %349 = vmatpush.bf16.msra.mxu0 0
    %350 = vmatpush.bf16.msra.mxu0 0
    %351 = vmatpush.bf16.msra.mxu0 0
    %352 = vmatpush.bf16.msra.mxu0 0
    %353 = vmatpush.bf16.msra.mxu0 0
    %354 = vmatpush.bf16.msra.mxu0 %v342
    %355 = vmatmul.bf16.gmra.mxu0 %v345
    %v356 = vpop.f32.mrf.mxu0
    %v357 = vadd.f32 0.0, %v356
    %v358 = vpop.f32.mrf.mxu0
    %v359 = vadd.f32 0.0, %v358
    %360 = vdwg.mxu0
    %363 = vrot.lane.b32.xlu0 %v237, 8
    %v364 = vpop.permute.xlu0 %363
    %365 = vrot.lane.b32.xlu0 %v239, 8
    %v366 = vpop.permute.xlu0 %365
    %371 = vrot.lane.b32.xlu0 %v297, 16
    %v372 = vpop.permute.xlu0 %371
    %373 = vrot.lane.b32.xlu0 %v299, 16
    %v374 = vpop.permute.xlu0 %373
    %379 = vrot.lane.b32.xlu0 %v357, 24
    %v380 = vpop.permute.xlu0 %379
    %381 = vrot.lane.b32.xlu0 %v359, 24
    %v382 = vpop.permute.xlu0 %381
    %v385 = vsel %vm65, %v177, %v364
    %v386 = vsel %vm65, %v179, %v366
    %v387 = vsel %vm139, %v385, %v372
    %v388 = vsel %vm139, %v386, %v374
    %vm389 = vcmask 195584
    %v390 = vsel %vm389, %v387, %v380
    %v391 = vsel %vm389, %v388, %v382
    %v393 = vperm.slane %v64, 0
    %v395 = vadd.f32 %v390, %v393
    %v396 = vadd.f32 %v391, %v393
    %vm397 = vcmp.gt.f32.partialorder %v395, 0.0
    %vm398 = vcmp.gt.f32.partialorder %v396, 0.0
    %v399 = vmin.f32 %v395, 0.0
    %v400 = vmin.f32 %v396, 0.0
    %v401 = vmul.f32 %v399, 1.442695
    %v402 = vpow.pop %v401
    %v403 = vmul.f32 %v400, 1.442695
    %v404 = vpow.pop %v403
    %v405 = vsub.f32 %v402, 1.0
    %v406 = vsub.f32 %v404, 1.0
    %v407 = vsel %vm397, %v395, %v405
    %v408 = vsel %vm398, %v396, %v406
    %v409 = vpack.c.bf16 %v408, %v407
    %v410 = vld [vmem:[#allocation2] sm:$0xf]
    %v411 = vld [vmem:[#allocation2 + $0x4] sm:$0xf]
    %v412 = vld [vmem:[#allocation2 + $0x8] sm:$0xf]
    %v413 = vld [vmem:[#allocation2 + $0xc] sm:$0xf]
    %s414 = scalar_lea.vmem %s4, 2
    %v415 = vld [vmem:[%s414] sm:$0x3]
    %s416 = scalar_lea.vmem %s5, 1
    %v417 = vld [vmem:[%s416] sm:$0x1]
    %v422 = vunpack.c.l.b16 %v410
    %v423 = vunpack.c.l.b16 %v411
    %v424 = vunpack.c.l.b16 %v412
    %v425 = vunpack.c.l.b16 %v413
    %v426 = vpack.c.b16 %v423, %v422
    %v427 = vpack.c.b16 %v425, %v424
    %v431 = vsel %vm94, %v409, 0
    %433 = vmatpush.bf16.msra.mxu0 0
    %434 = vmatpush.bf16.msra.mxu0 0
    %435 = vmatpush.bf16.msra.mxu0 0
    %436 = vmatpush.bf16.msra.mxu0 0
    %437 = vmatpush.bf16.msra.mxu0 0
    %438 = vmatpush.bf16.msra.mxu0 0
    %439 = vmatpush.bf16.msra.mxu0 %v427
    %440 = vmatpush.bf16.msra.mxu0 %v426
    %441 = vmatmul.bf16.gmra.mxu0 %v431
    %v442 = vpop.f32.mrf.mxu0
    %v443 = vadd.f32 0.0, %v442
    %v444 = vpop.f32.mrf.mxu0
    %v445 = vadd.f32 0.0, %v444
    %446 = vdwg.mxu0
    %v447 = vpack.c.bf16 %v443, %v443
    %v448 = vpack.c.bf16 %v445, %v445
    %v451 = vunpack.c.l.b16 %v447
    %v452 = vunpack.c.l.b16 %v448
    %v453 = vpack.c.b16 %v452, %v451
    %v455 = vsel %vm94, %v415, 0
    %v458 = vsel %vm94, %v453, 0
    %460 = vmatpush.bf16.xpose.msra.mxu0 0
    %461 = vmatpush.bf16.xpose.msra.mxu0 0
    %462 = vmatpush.bf16.xpose.msra.mxu0 0
    %463 = vmatpush.bf16.xpose.msra.mxu0 0
    %464 = vmatpush.bf16.xpose.msra.mxu0 0
    %465 = vmatpush.bf16.xpose.msra.mxu0 0
    %466 = vmatpush.bf16.xpose.msra.mxu0 0
    %467 = vmatpush.bf16.xpose.msra.mxu0 %v458
    %468 = vmatmul.bf16.gmra.mxu0 %v455
    %v469 = vpop.f32.mrf.mxu0
    %v470 = vadd.f32 0.0, %v469
    %v471 = vpop.f32.mrf.mxu0
    %472 = vdwg.mxu0
    %474 = vset.pattern.permute.xlu0 32
    %475 = vperm.xlu0 %474, %v443
    %v476 = vpop.permute.xlu0 %475
    %479 = vset.pattern.permute.xlu0 32
    %480 = vperm.xlu0 %479, %v445
    %v481 = vpop.permute.xlu0 %480
    %v483 = vperm.slane %v470, 0
    %v484 = vadd.f32 %v476, %v483
    %v485 = vadd.f32 %v481, %v483
    %v486 = vmul.f32 %v484, 0.2
    %v487 = vmul.f32 %v485, 0.2
    %v488 = vmax.f32 %v484, %v486
    %v489 = vmax.f32 %v485, %v487
    %v490 = vsel %vm118, %v488, -1e+30
    %v491 = vsel %vm119, %v489, -1e+30
    %v492 = vsel %vm139, %v490, -inf
    %493 = vmax.xlane.f32.xlu0 %v492
    %v494 = vpop.xlane.xlu0 %493
    %v495 = vsel %vm139, %v491, -inf
    %496 = vmax.xlane.f32.xlu0 %v495
    %v497 = vpop.xlane.xlu0 %496
    %v498 = vsub.f32 %v490, %v494
    %v499 = vsub.f32 %v491, %v497
    %v500 = vmul.f32 %v498, 1.442695
    %v501 = vpow.pop %v500
    %v502 = vmul.f32 %v499, 1.442695
    %v503 = vpow.pop %v502
    %v504 = vsel %vm139, %v501, 0.0
    %505 = vadd.xlane.f32.xlu0 %v504
    %v506 = vpop.xlane.xlu0 %505
    %v507 = vsel %vm139, %v503, 0.0
    %508 = vadd.xlane.f32.xlu0 %v507
    %v509 = vpop.xlane.xlu0 %508
    %v510 = vrcp.pop %v506
    %v511 = vrcp.pop %v509
    %v512 = vmul.f32 %v501, %v510
    %v513 = vmul.f32 %v503, %v511
    %v514 = vpack.c.bf16 %v513, %v512
    %v517 = vsel %vm139, %v514, 0
    %519 = vmatpush.bf16.msra.mxu0 0
    %520 = vmatpush.bf16.msra.mxu0 0
    %521 = vmatpush.bf16.msra.mxu0 0
    %522 = vmatpush.bf16.msra.mxu0 0
    %523 = vmatpush.bf16.msra.mxu0 0
    %524 = vmatpush.bf16.msra.mxu0 0
    %525 = vmatpush.bf16.msra.mxu0 0
    %526 = vmatpush.bf16.msra.mxu0 %v453
    %527 = vmatmul.bf16.gmra.mxu0 %v517
    %v528 = vpop.f32.mrf.mxu0
    %v529 = vadd.f32 0.0, %v528
    %v530 = vpop.f32.mrf.mxu0
    %v531 = vadd.f32 0.0, %v530
    %532 = vdwg.mxu0
    %533 = vset.pattern.permute.xlu0 33
    %534 = vperm.xlu0 %533, %v443
    %v535 = vpop.permute.xlu0 %534
    %537 = vset.pattern.permute.xlu0 33
    %538 = vperm.xlu0 %537, %v445
    %v539 = vpop.permute.xlu0 %538
    %v541 = vperm.slane %v470, 1
    %v542 = vadd.f32 %v535, %v541
    %v543 = vadd.f32 %v539, %v541
    %v544 = vmul.f32 %v542, 0.2
    %v545 = vmul.f32 %v543, 0.2
    %v546 = vmax.f32 %v542, %v544
    %v547 = vmax.f32 %v543, %v545
    %v548 = vsel %vm118, %v546, -1e+30
    %v549 = vsel %vm119, %v547, -1e+30
    %v550 = vsel %vm139, %v548, -inf
    %551 = vmax.xlane.f32.xlu0 %v550
    %v552 = vpop.xlane.xlu0 %551
    %v553 = vsel %vm139, %v549, -inf
    %554 = vmax.xlane.f32.xlu0 %v553
    %v555 = vpop.xlane.xlu0 %554
    %v556 = vsub.f32 %v548, %v552
    %v557 = vsub.f32 %v549, %v555
    %v558 = vmul.f32 %v556, 1.442695
    %v559 = vpow.pop %v558
    %v560 = vmul.f32 %v557, 1.442695
    %v561 = vpow.pop %v560
    %v562 = vsel %vm139, %v559, 0.0
    %563 = vadd.xlane.f32.xlu0 %v562
    %v564 = vpop.xlane.xlu0 %563
    %v565 = vsel %vm139, %v561, 0.0
    %566 = vadd.xlane.f32.xlu0 %v565
    %v567 = vpop.xlane.xlu0 %566
    %v568 = vrcp.pop %v564
    %v569 = vrcp.pop %v567
    %v570 = vmul.f32 %v559, %v568
    %v571 = vmul.f32 %v561, %v569
    %v572 = vpack.c.bf16 %v571, %v570
    %573 = vrot.lane.b32.xlu0 %v453, 120
    %v574 = vpop.permute.xlu0 %573
    %v577 = vsel %vm139, %v572, 0
    %579 = vmatpush.bf16.msra.mxu0 0
    %580 = vmatpush.bf16.msra.mxu0 0
    %581 = vmatpush.bf16.msra.mxu0 0
    %582 = vmatpush.bf16.msra.mxu0 0
    %583 = vmatpush.bf16.msra.mxu0 0
    %584 = vmatpush.bf16.msra.mxu0 0
    %585 = vmatpush.bf16.msra.mxu0 0
    %586 = vmatpush.bf16.msra.mxu0 %v574
    %587 = vmatmul.bf16.gmra.mxu0 %v577
    %v588 = vpop.f32.mrf.mxu0
    %v589 = vadd.f32 0.0, %v588
    %v590 = vpop.f32.mrf.mxu0
    %v591 = vadd.f32 0.0, %v590
    %592 = vdwg.mxu0
    %593 = vset.pattern.permute.xlu0 34
    %594 = vperm.xlu0 %593, %v443
    %v595 = vpop.permute.xlu0 %594
    %597 = vset.pattern.permute.xlu0 34
    %598 = vperm.xlu0 %597, %v445
    %v599 = vpop.permute.xlu0 %598
    %v601 = vperm.slane %v470, 2
    %v602 = vadd.f32 %v595, %v601
    %v603 = vadd.f32 %v599, %v601
    %v604 = vmul.f32 %v602, 0.2
    %v605 = vmul.f32 %v603, 0.2
    %v606 = vmax.f32 %v602, %v604
    %v607 = vmax.f32 %v603, %v605
    %v608 = vsel %vm118, %v606, -1e+30
    %v609 = vsel %vm119, %v607, -1e+30
    %v610 = vsel %vm139, %v608, -inf
    %611 = vmax.xlane.f32.xlu0 %v610
    %v612 = vpop.xlane.xlu0 %611
    %v613 = vsel %vm139, %v609, -inf
    %614 = vmax.xlane.f32.xlu0 %v613
    %v615 = vpop.xlane.xlu0 %614
    %v616 = vsub.f32 %v608, %v612
    %v617 = vsub.f32 %v609, %v615
    %v618 = vmul.f32 %v616, 1.442695
    %v619 = vpow.pop %v618
    %v620 = vmul.f32 %v617, 1.442695
    %v621 = vpow.pop %v620
    %v622 = vsel %vm139, %v619, 0.0
    %623 = vadd.xlane.f32.xlu0 %v622
    %v624 = vpop.xlane.xlu0 %623
    %v625 = vsel %vm139, %v621, 0.0
    %626 = vadd.xlane.f32.xlu0 %v625
    %v627 = vpop.xlane.xlu0 %626
    %v628 = vrcp.pop %v624
    %v629 = vrcp.pop %v627
    %v630 = vmul.f32 %v619, %v628
    %v631 = vmul.f32 %v621, %v629
    %v632 = vpack.c.bf16 %v631, %v630
    %633 = vrot.lane.b32.xlu0 %v453, 112
    %v634 = vpop.permute.xlu0 %633
    %v637 = vsel %vm139, %v632, 0
    %639 = vmatpush.bf16.msra.mxu0 0
    %640 = vmatpush.bf16.msra.mxu0 0
    %641 = vmatpush.bf16.msra.mxu0 0
    %642 = vmatpush.bf16.msra.mxu0 0
    %643 = vmatpush.bf16.msra.mxu0 0
    %644 = vmatpush.bf16.msra.mxu0 0
    %645 = vmatpush.bf16.msra.mxu0 0
    %646 = vmatpush.bf16.msra.mxu0 %v634
    %647 = vmatmul.bf16.gmra.mxu0 %v637
    %v648 = vpop.f32.mrf.mxu0
    %v649 = vadd.f32 0.0, %v648
    %v650 = vpop.f32.mrf.mxu0
    %v651 = vadd.f32 0.0, %v650
    %652 = vdwg.mxu0
    %653 = vset.pattern.permute.xlu0 35
    %654 = vperm.xlu0 %653, %v443
    %v655 = vpop.permute.xlu0 %654
    %657 = vset.pattern.permute.xlu0 35
    %658 = vperm.xlu0 %657, %v445
    %v659 = vpop.permute.xlu0 %658
    %v661 = vperm.slane %v470, 3
    %v662 = vadd.f32 %v655, %v661
    %v663 = vadd.f32 %v659, %v661
    %v664 = vmul.f32 %v662, 0.2
    %v665 = vmul.f32 %v663, 0.2
    %v666 = vmax.f32 %v662, %v664
    %v667 = vmax.f32 %v663, %v665
    %v668 = vsel %vm118, %v666, -1e+30
    %v669 = vsel %vm119, %v667, -1e+30
    %v670 = vsel %vm139, %v668, -inf
    %671 = vmax.xlane.f32.xlu0 %v670
    %v672 = vpop.xlane.xlu0 %671
    %v673 = vsel %vm139, %v669, -inf
    %674 = vmax.xlane.f32.xlu0 %v673
    %v675 = vpop.xlane.xlu0 %674
    %v676 = vsub.f32 %v668, %v672
    %v677 = vsub.f32 %v669, %v675
    %v678 = vmul.f32 %v676, 1.442695
    %v679 = vpow.pop %v678
    %v680 = vmul.f32 %v677, 1.442695
    %v681 = vpow.pop %v680
    %v682 = vsel %vm139, %v679, 0.0
    %683 = vadd.xlane.f32.xlu0 %v682
    %v684 = vpop.xlane.xlu0 %683
    %v685 = vsel %vm139, %v681, 0.0
    %686 = vadd.xlane.f32.xlu0 %v685
    %v687 = vpop.xlane.xlu0 %686
    %v688 = vrcp.pop %v684
    %v689 = vrcp.pop %v687
    %v690 = vmul.f32 %v679, %v688
    %v691 = vmul.f32 %v681, %v689
    %v692 = vpack.c.bf16 %v691, %v690
    %693 = vrot.lane.b32.xlu0 %v453, 104
    %v694 = vpop.permute.xlu0 %693
    %v697 = vsel %vm139, %v692, 0
    %699 = vmatpush.bf16.msra.mxu0 0
    %700 = vmatpush.bf16.msra.mxu0 0
    %701 = vmatpush.bf16.msra.mxu0 0
    %702 = vmatpush.bf16.msra.mxu0 0
    %703 = vmatpush.bf16.msra.mxu0 0
    %704 = vmatpush.bf16.msra.mxu0 0
    %705 = vmatpush.bf16.msra.mxu0 0
    %706 = vmatpush.bf16.msra.mxu0 %v694
    %707 = vmatmul.bf16.gmra.mxu0 %v697
    %v708 = vpop.f32.mrf.mxu0
    %v709 = vadd.f32 0.0, %v708
    %v710 = vpop.f32.mrf.mxu0
    %v711 = vadd.f32 0.0, %v710
    %712 = vdwg.mxu0
    %715 = vrot.lane.b32.xlu0 %v589, 8
    %v716 = vpop.permute.xlu0 %715
    %717 = vrot.lane.b32.xlu0 %v591, 8
    %v718 = vpop.permute.xlu0 %717
    %723 = vrot.lane.b32.xlu0 %v649, 16
    %v724 = vpop.permute.xlu0 %723
    %725 = vrot.lane.b32.xlu0 %v651, 16
    %v726 = vpop.permute.xlu0 %725
    %731 = vrot.lane.b32.xlu0 %v709, 24
    %v732 = vpop.permute.xlu0 %731
    %733 = vrot.lane.b32.xlu0 %v711, 24
    %v734 = vpop.permute.xlu0 %733
    %v737 = vsel %vm65, %v529, %v716
    %v738 = vsel %vm65, %v531, %v718
    %v739 = vsel %vm139, %v737, %v724
    %v740 = vsel %vm139, %v738, %v726
    %v741 = vsel %vm389, %v739, %v732
    %v742 = vsel %vm389, %v740, %v734
    %v744 = vperm.slane %v417, 0
    %v746 = vadd.f32 %v741, %v744
    %v747 = vadd.f32 %v742, %v744
    %vm748 = vcmp.gt.f32.partialorder %v746, 0.0
    %vm749 = vcmp.gt.f32.partialorder %v747, 0.0
    %v750 = vmin.f32 %v746, 0.0
    %v751 = vmin.f32 %v747, 0.0
    %v752 = vmul.f32 %v750, 1.442695
    %v753 = vpow.pop %v752
    %v754 = vmul.f32 %v751, 1.442695
    %v755 = vpow.pop %v754
    %v756 = vsub.f32 %v753, 1.0
    %v757 = vsub.f32 %v755, 1.0
    %v758 = vsel %vm748, %v746, %v756
    %v759 = vsel %vm749, %v747, %v757
    %v760 = vpack.c.bf16 %v759, %v758
    %s761 = scalar_lea.vmem [#allocation2], 16
    %v762 = vld [vmem:[%s761] sm:$0xf]
    %v763 = vld [vmem:[%s761 + $0x4] sm:$0xf]
    %v764 = vld [vmem:[%s761 + $0x8] sm:$0xf]
    %v765 = vld [vmem:[%s761 + $0xc] sm:$0xf]
    %s766 = scalar_lea.vmem %s4, 4
    %v767 = vld [vmem:[%s766] sm:$0x3]
    %s768 = scalar_lea.vmem %s5, 2
    %v769 = vld [vmem:[%s768] sm:$0x1]
    %v774 = vunpack.c.l.b16 %v762
    %v775 = vunpack.c.l.b16 %v763
    %v776 = vunpack.c.l.b16 %v764
    %v777 = vunpack.c.l.b16 %v765
    %v778 = vpack.c.b16 %v775, %v774
    %v779 = vpack.c.b16 %v777, %v776
    %v783 = vsel %vm94, %v760, 0
    %785 = vmatpush.bf16.msra.mxu0 0
    %786 = vmatpush.bf16.msra.mxu0 0
    %787 = vmatpush.bf16.msra.mxu0 0
    %788 = vmatpush.bf16.msra.mxu0 0
    %789 = vmatpush.bf16.msra.mxu0 0
    %790 = vmatpush.bf16.msra.mxu0 0
    %791 = vmatpush.bf16.msra.mxu0 %v779
    %792 = vmatpush.bf16.msra.mxu0 %v778
    %793 = vmatmul.bf16.gmra.mxu0 %v783
    %v794 = vpop.f32.mrf.mxu0
    %v795 = vadd.f32 0.0, %v794
    %v796 = vpop.f32.mrf.mxu0
    %v797 = vadd.f32 0.0, %v796
    %798 = vdwg.mxu0
    %v799 = vpack.c.bf16 %v795, %v795
    %v800 = vpack.c.bf16 %v797, %v797
    %v803 = vunpack.c.l.b16 %v799
    %v804 = vunpack.c.l.b16 %v800
    %v805 = vpack.c.b16 %v804, %v803
    %v807 = vsel %vm94, %v767, 0
    %v810 = vsel %vm94, %v805, 0
    %812 = vmatpush.bf16.xpose.msra.mxu0 0
    %813 = vmatpush.bf16.xpose.msra.mxu0 0
    %814 = vmatpush.bf16.xpose.msra.mxu0 0
    %815 = vmatpush.bf16.xpose.msra.mxu0 0
    %816 = vmatpush.bf16.xpose.msra.mxu0 0
    %817 = vmatpush.bf16.xpose.msra.mxu0 0
    %818 = vmatpush.bf16.xpose.msra.mxu0 0
    %819 = vmatpush.bf16.xpose.msra.mxu0 %v810
    %820 = vmatmul.bf16.gmra.mxu0 %v807
    %v821 = vpop.f32.mrf.mxu0
    %v822 = vadd.f32 0.0, %v821
    %v823 = vpop.f32.mrf.mxu0
    %824 = vdwg.mxu0
    %826 = vset.pattern.permute.xlu0 32
    %827 = vperm.xlu0 %826, %v795
    %v828 = vpop.permute.xlu0 %827
    %831 = vset.pattern.permute.xlu0 32
    %832 = vperm.xlu0 %831, %v797
    %v833 = vpop.permute.xlu0 %832
    %v835 = vperm.slane %v822, 0
    %v836 = vadd.f32 %v828, %v835
    %v837 = vadd.f32 %v833, %v835
    %v838 = vmul.f32 %v836, 0.2
    %v839 = vmul.f32 %v837, 0.2
    %v840 = vmax.f32 %v836, %v838
    %v841 = vmax.f32 %v837, %v839
    %v842 = vsel %vm118, %v840, -1e+30
    %v843 = vsel %vm119, %v841, -1e+30
    %v844 = vsel %vm139, %v842, -inf
    %845 = vmax.xlane.f32.xlu0 %v844
    %v846 = vpop.xlane.xlu0 %845
    %v847 = vsel %vm139, %v843, -inf
    %848 = vmax.xlane.f32.xlu0 %v847
    %v849 = vpop.xlane.xlu0 %848
    %v850 = vsub.f32 %v842, %v846
    %v851 = vsub.f32 %v843, %v849
    %v852 = vmul.f32 %v850, 1.442695
    %v853 = vpow.pop %v852
    %v854 = vmul.f32 %v851, 1.442695
    %v855 = vpow.pop %v854
    %v856 = vsel %vm139, %v853, 0.0
    %857 = vadd.xlane.f32.xlu0 %v856
    %v858 = vpop.xlane.xlu0 %857
    %v859 = vsel %vm139, %v855, 0.0
    %860 = vadd.xlane.f32.xlu0 %v859
    %v861 = vpop.xlane.xlu0 %860
    %v862 = vrcp.pop %v858
    %v863 = vrcp.pop %v861
    %v864 = vmul.f32 %v853, %v862
    %v865 = vmul.f32 %v855, %v863
    %v866 = vpack.c.bf16 %v865, %v864
    %v869 = vsel %vm139, %v866, 0
    %871 = vmatpush.bf16.msra.mxu0 0
    %872 = vmatpush.bf16.msra.mxu0 0
    %873 = vmatpush.bf16.msra.mxu0 0
    %874 = vmatpush.bf16.msra.mxu0 0
    %875 = vmatpush.bf16.msra.mxu0 0
    %876 = vmatpush.bf16.msra.mxu0 0
    %877 = vmatpush.bf16.msra.mxu0 0
    %878 = vmatpush.bf16.msra.mxu0 %v805
    %879 = vmatmul.bf16.gmra.mxu0 %v869
    %v880 = vpop.f32.mrf.mxu0
    %v881 = vadd.f32 0.0, %v880
    %v882 = vpop.f32.mrf.mxu0
    %v883 = vadd.f32 0.0, %v882
    %884 = vdwg.mxu0
    %885 = vset.pattern.permute.xlu0 33
    %886 = vperm.xlu0 %885, %v795
    %v887 = vpop.permute.xlu0 %886
    %889 = vset.pattern.permute.xlu0 33
    %890 = vperm.xlu0 %889, %v797
    %v891 = vpop.permute.xlu0 %890
    %v893 = vperm.slane %v822, 1
    %v894 = vadd.f32 %v887, %v893
    %v895 = vadd.f32 %v891, %v893
    %v896 = vmul.f32 %v894, 0.2
    %v897 = vmul.f32 %v895, 0.2
    %v898 = vmax.f32 %v894, %v896
    %v899 = vmax.f32 %v895, %v897
    %v900 = vsel %vm118, %v898, -1e+30
    %v901 = vsel %vm119, %v899, -1e+30
    %v902 = vsel %vm139, %v900, -inf
    %903 = vmax.xlane.f32.xlu0 %v902
    %v904 = vpop.xlane.xlu0 %903
    %v905 = vsel %vm139, %v901, -inf
    %906 = vmax.xlane.f32.xlu0 %v905
    %v907 = vpop.xlane.xlu0 %906
    %v908 = vsub.f32 %v900, %v904
    %v909 = vsub.f32 %v901, %v907
    %v910 = vmul.f32 %v908, 1.442695
    %v911 = vpow.pop %v910
    %v912 = vmul.f32 %v909, 1.442695
    %v913 = vpow.pop %v912
    %v914 = vsel %vm139, %v911, 0.0
    %915 = vadd.xlane.f32.xlu0 %v914
    %v916 = vpop.xlane.xlu0 %915
    %v917 = vsel %vm139, %v913, 0.0
    %918 = vadd.xlane.f32.xlu0 %v917
    %v919 = vpop.xlane.xlu0 %918
    %v920 = vrcp.pop %v916
    %v921 = vrcp.pop %v919
    %v922 = vmul.f32 %v911, %v920
    %v923 = vmul.f32 %v913, %v921
    %v924 = vpack.c.bf16 %v923, %v922
    %925 = vrot.lane.b32.xlu0 %v805, 120
    %v926 = vpop.permute.xlu0 %925
    %v929 = vsel %vm139, %v924, 0
    %931 = vmatpush.bf16.msra.mxu0 0
    %932 = vmatpush.bf16.msra.mxu0 0
    %933 = vmatpush.bf16.msra.mxu0 0
    %934 = vmatpush.bf16.msra.mxu0 0
    %935 = vmatpush.bf16.msra.mxu0 0
    %936 = vmatpush.bf16.msra.mxu0 0
    %937 = vmatpush.bf16.msra.mxu0 0
    %938 = vmatpush.bf16.msra.mxu0 %v926
    %939 = vmatmul.bf16.gmra.mxu0 %v929
    %v940 = vpop.f32.mrf.mxu0
    %v941 = vadd.f32 0.0, %v940
    %v942 = vpop.f32.mrf.mxu0
    %v943 = vadd.f32 0.0, %v942
    %944 = vdwg.mxu0
    %945 = vset.pattern.permute.xlu0 34
    %946 = vperm.xlu0 %945, %v795
    %v947 = vpop.permute.xlu0 %946
    %949 = vset.pattern.permute.xlu0 34
    %950 = vperm.xlu0 %949, %v797
    %v951 = vpop.permute.xlu0 %950
    %v953 = vperm.slane %v822, 2
    %v954 = vadd.f32 %v947, %v953
    %v955 = vadd.f32 %v951, %v953
    %v956 = vmul.f32 %v954, 0.2
    %v957 = vmul.f32 %v955, 0.2
    %v958 = vmax.f32 %v954, %v956
    %v959 = vmax.f32 %v955, %v957
    %v960 = vsel %vm118, %v958, -1e+30
    %v961 = vsel %vm119, %v959, -1e+30
    %v962 = vsel %vm139, %v960, -inf
    %963 = vmax.xlane.f32.xlu0 %v962
    %v964 = vpop.xlane.xlu0 %963
    %v965 = vsel %vm139, %v961, -inf
    %966 = vmax.xlane.f32.xlu0 %v965
    %v967 = vpop.xlane.xlu0 %966
    %v968 = vsub.f32 %v960, %v964
    %v969 = vsub.f32 %v961, %v967
    %v970 = vmul.f32 %v968, 1.442695
    %v971 = vpow.pop %v970
    %v972 = vmul.f32 %v969, 1.442695
    %v973 = vpow.pop %v972
    %v974 = vsel %vm139, %v971, 0.0
    %975 = vadd.xlane.f32.xlu0 %v974
    %v976 = vpop.xlane.xlu0 %975
    %v977 = vsel %vm139, %v973, 0.0
    %978 = vadd.xlane.f32.xlu0 %v977
    %v979 = vpop.xlane.xlu0 %978
    %v980 = vrcp.pop %v976
    %v981 = vrcp.pop %v979
    %v982 = vmul.f32 %v971, %v980
    %v983 = vmul.f32 %v973, %v981
    %v984 = vpack.c.bf16 %v983, %v982
    %985 = vrot.lane.b32.xlu0 %v805, 112
    %v986 = vpop.permute.xlu0 %985
    %v989 = vsel %vm139, %v984, 0
    %991 = vmatpush.bf16.msra.mxu0 0
    %992 = vmatpush.bf16.msra.mxu0 0
    %993 = vmatpush.bf16.msra.mxu0 0
    %994 = vmatpush.bf16.msra.mxu0 0
    %995 = vmatpush.bf16.msra.mxu0 0
    %996 = vmatpush.bf16.msra.mxu0 0
    %997 = vmatpush.bf16.msra.mxu0 0
    %998 = vmatpush.bf16.msra.mxu0 %v986
    %999 = vmatmul.bf16.gmra.mxu0 %v989
    %v1000 = vpop.f32.mrf.mxu0
    %v1001 = vadd.f32 0.0, %v1000
    %v1002 = vpop.f32.mrf.mxu0
    %v1003 = vadd.f32 0.0, %v1002
    %1004 = vdwg.mxu0
    %1005 = vset.pattern.permute.xlu0 35
    %1006 = vperm.xlu0 %1005, %v795
    %v1007 = vpop.permute.xlu0 %1006
    %1009 = vset.pattern.permute.xlu0 35
    %1010 = vperm.xlu0 %1009, %v797
    %v1011 = vpop.permute.xlu0 %1010
    %v1013 = vperm.slane %v822, 3
    %v1014 = vadd.f32 %v1007, %v1013
    %v1015 = vadd.f32 %v1011, %v1013
    %v1016 = vmul.f32 %v1014, 0.2
    %v1017 = vmul.f32 %v1015, 0.2
    %v1018 = vmax.f32 %v1014, %v1016
    %v1019 = vmax.f32 %v1015, %v1017
    %v1020 = vsel %vm118, %v1018, -1e+30
    %v1021 = vsel %vm119, %v1019, -1e+30
    %v1022 = vsel %vm139, %v1020, -inf
    %1023 = vmax.xlane.f32.xlu0 %v1022
    %v1024 = vpop.xlane.xlu0 %1023
    %v1025 = vsel %vm139, %v1021, -inf
    %1026 = vmax.xlane.f32.xlu0 %v1025
    %v1027 = vpop.xlane.xlu0 %1026
    %v1028 = vsub.f32 %v1020, %v1024
    %v1029 = vsub.f32 %v1021, %v1027
    %v1030 = vmul.f32 %v1028, 1.442695
    %v1031 = vpow.pop %v1030
    %v1032 = vmul.f32 %v1029, 1.442695
    %v1033 = vpow.pop %v1032
    %v1034 = vsel %vm139, %v1031, 0.0
    %1035 = vadd.xlane.f32.xlu0 %v1034
    %v1036 = vpop.xlane.xlu0 %1035
    %v1037 = vsel %vm139, %v1033, 0.0
    %1038 = vadd.xlane.f32.xlu0 %v1037
    %v1039 = vpop.xlane.xlu0 %1038
    %v1040 = vrcp.pop %v1036
    %v1041 = vrcp.pop %v1039
    %v1042 = vmul.f32 %v1031, %v1040
    %v1043 = vmul.f32 %v1033, %v1041
    %v1044 = vpack.c.bf16 %v1043, %v1042
    %1045 = vrot.lane.b32.xlu0 %v805, 104
    %v1046 = vpop.permute.xlu0 %1045
    %v1049 = vsel %vm139, %v1044, 0
    %1051 = vmatpush.bf16.msra.mxu0 0
    %1052 = vmatpush.bf16.msra.mxu0 0
    %1053 = vmatpush.bf16.msra.mxu0 0
    %1054 = vmatpush.bf16.msra.mxu0 0
    %1055 = vmatpush.bf16.msra.mxu0 0
    %1056 = vmatpush.bf16.msra.mxu0 0
    %1057 = vmatpush.bf16.msra.mxu0 0
    %1058 = vmatpush.bf16.msra.mxu0 %v1046
    %1059 = vmatmul.bf16.gmra.mxu0 %v1049
    %v1060 = vpop.f32.mrf.mxu0
    %v1061 = vadd.f32 0.0, %v1060
    %v1062 = vpop.f32.mrf.mxu0
    %v1063 = vadd.f32 0.0, %v1062
    %1064 = vdwg.mxu0
    %1067 = vrot.lane.b32.xlu0 %v941, 8
    %v1068 = vpop.permute.xlu0 %1067
    %1069 = vrot.lane.b32.xlu0 %v943, 8
    %v1070 = vpop.permute.xlu0 %1069
    %1075 = vrot.lane.b32.xlu0 %v1001, 16
    %v1076 = vpop.permute.xlu0 %1075
    %1077 = vrot.lane.b32.xlu0 %v1003, 16
    %v1078 = vpop.permute.xlu0 %1077
    %1083 = vrot.lane.b32.xlu0 %v1061, 24
    %v1084 = vpop.permute.xlu0 %1083
    %1085 = vrot.lane.b32.xlu0 %v1063, 24
    %v1086 = vpop.permute.xlu0 %1085
    %v1089 = vsel %vm65, %v881, %v1068
    %v1090 = vsel %vm65, %v883, %v1070
    %v1091 = vsel %vm139, %v1089, %v1076
    %v1092 = vsel %vm139, %v1090, %v1078
    %v1093 = vsel %vm389, %v1091, %v1084
    %v1094 = vsel %vm389, %v1092, %v1086
    %v1096 = vperm.slane %v769, 0
    %v1098 = vadd.f32 %v1093, %v1096
    %v1099 = vadd.f32 %v1094, %v1096
    %vm1100 = vcmp.gt.f32.partialorder %v1098, 0.0
    %vm1101 = vcmp.gt.f32.partialorder %v1099, 0.0
    %v1102 = vmin.f32 %v1098, 0.0
    %v1103 = vmin.f32 %v1099, 0.0
    %v1104 = vmul.f32 %v1102, 1.442695
    %v1105 = vpow.pop %v1104
    %v1106 = vmul.f32 %v1103, 1.442695
    %v1107 = vpow.pop %v1106
    %v1108 = vsub.f32 %v1105, 1.0
    %v1109 = vsub.f32 %v1107, 1.0
    %v1110 = vsel %vm1100, %v1098, %v1108
    %v1111 = vsel %vm1101, %v1099, %v1109
    %v1112 = vpack.c.bf16 %v1111, %v1110
    %s1113 = scalar_lea.vmem [#allocation2], 32
    %v1114 = vld [vmem:[%s1113] sm:$0xf]
    %v1115 = vld [vmem:[%s1113 + $0x4] sm:$0xf]
    %v1116 = vld [vmem:[%s1113 + $0x8] sm:$0xf]
    %v1117 = vld [vmem:[%s1113 + $0xc] sm:$0xf]
    %s1118 = scalar_lea.vmem %s4, 6
    %v1119 = vld [vmem:[%s1118] sm:$0x3]
    %s1120 = scalar_lea.vmem %s5, 3
    %v1121 = vld [vmem:[%s1120] sm:$0x1]
    %v1126 = vunpack.c.l.b16 %v1114
    %v1127 = vunpack.c.l.b16 %v1115
    %v1128 = vunpack.c.l.b16 %v1116
    %v1129 = vunpack.c.l.b16 %v1117
    %v1130 = vpack.c.b16 %v1127, %v1126
    %v1131 = vpack.c.b16 %v1129, %v1128
    %v1135 = vsel %vm94, %v1112, 0
    %1137 = vmatpush.bf16.msra.mxu0 0
    %1138 = vmatpush.bf16.msra.mxu0 0
    %1139 = vmatpush.bf16.msra.mxu0 0
    %1140 = vmatpush.bf16.msra.mxu0 0
    %1141 = vmatpush.bf16.msra.mxu0 0
    %1142 = vmatpush.bf16.msra.mxu0 0
    %1143 = vmatpush.bf16.msra.mxu0 %v1131
    %1144 = vmatpush.bf16.msra.mxu0 %v1130
    %1145 = vmatmul.bf16.gmra.mxu0 %v1135
    %v1146 = vpop.f32.mrf.mxu0
    %v1147 = vadd.f32 0.0, %v1146
    %v1148 = vpop.f32.mrf.mxu0
    %v1149 = vadd.f32 0.0, %v1148
    %1150 = vdwg.mxu0
    %v1151 = vpack.c.bf16 %v1147, %v1147
    %v1152 = vpack.c.bf16 %v1149, %v1149
    %v1155 = vunpack.c.l.b16 %v1151
    %v1156 = vunpack.c.l.b16 %v1152
    %v1157 = vpack.c.b16 %v1156, %v1155
    %v1159 = vsel %vm94, %v1119, 0
    %v1162 = vsel %vm94, %v1157, 0
    %1164 = vmatpush.bf16.xpose.msra.mxu0 0
    %1165 = vmatpush.bf16.xpose.msra.mxu0 0
    %1166 = vmatpush.bf16.xpose.msra.mxu0 0
    %1167 = vmatpush.bf16.xpose.msra.mxu0 0
    %1168 = vmatpush.bf16.xpose.msra.mxu0 0
    %1169 = vmatpush.bf16.xpose.msra.mxu0 0
    %1170 = vmatpush.bf16.xpose.msra.mxu0 0
    %1171 = vmatpush.bf16.xpose.msra.mxu0 %v1162
    %1172 = vmatmul.bf16.gmra.mxu0 %v1159
    %v1173 = vpop.f32.mrf.mxu0
    %v1174 = vadd.f32 0.0, %v1173
    %v1175 = vpop.f32.mrf.mxu0
    %1176 = vdwg.mxu0
    %1178 = vset.pattern.permute.xlu0 32
    %1179 = vperm.xlu0 %1178, %v1147
    %v1180 = vpop.permute.xlu0 %1179
    %1183 = vset.pattern.permute.xlu0 32
    %1184 = vperm.xlu0 %1183, %v1149
    %v1185 = vpop.permute.xlu0 %1184
    %v1187 = vperm.slane %v1174, 0
    %v1188 = vadd.f32 %v1180, %v1187
    %v1189 = vadd.f32 %v1185, %v1187
    %v1190 = vmul.f32 %v1188, 0.2
    %v1191 = vmul.f32 %v1189, 0.2
    %v1192 = vmax.f32 %v1188, %v1190
    %v1193 = vmax.f32 %v1189, %v1191
    %v1194 = vsel %vm118, %v1192, -1e+30
    %v1195 = vsel %vm119, %v1193, -1e+30
    %v1196 = vsel %vm139, %v1194, -inf
    %1197 = vmax.xlane.f32.xlu0 %v1196
    %v1198 = vpop.xlane.xlu0 %1197
    %v1199 = vsel %vm139, %v1195, -inf
    %1200 = vmax.xlane.f32.xlu0 %v1199
    %v1201 = vpop.xlane.xlu0 %1200
    %v1202 = vsub.f32 %v1194, %v1198
    %v1203 = vsub.f32 %v1195, %v1201
    %v1204 = vmul.f32 %v1202, 1.442695
    %v1205 = vpow.pop %v1204
    %v1206 = vmul.f32 %v1203, 1.442695
    %v1207 = vpow.pop %v1206
    %v1208 = vsel %vm139, %v1205, 0.0
    %1209 = vadd.xlane.f32.xlu0 %v1208
    %v1210 = vpop.xlane.xlu0 %1209
    %v1211 = vsel %vm139, %v1207, 0.0
    %1212 = vadd.xlane.f32.xlu0 %v1211
    %v1213 = vpop.xlane.xlu0 %1212
    %v1214 = vrcp.pop %v1210
    %v1215 = vrcp.pop %v1213
    %v1216 = vmul.f32 %v1205, %v1214
    %v1217 = vmul.f32 %v1207, %v1215
    %v1218 = vpack.c.bf16 %v1217, %v1216
    %v1221 = vsel %vm139, %v1218, 0
    %1223 = vmatpush.bf16.msra.mxu0 0
    %1224 = vmatpush.bf16.msra.mxu0 0
    %1225 = vmatpush.bf16.msra.mxu0 0
    %1226 = vmatpush.bf16.msra.mxu0 0
    %1227 = vmatpush.bf16.msra.mxu0 0
    %1228 = vmatpush.bf16.msra.mxu0 0
    %1229 = vmatpush.bf16.msra.mxu0 0
    %1230 = vmatpush.bf16.msra.mxu0 %v1157
    %1231 = vmatmul.bf16.gmra.mxu0 %v1221
    %v1232 = vpop.f32.mrf.mxu0
    %v1233 = vadd.f32 0.0, %v1232
    %v1234 = vpop.f32.mrf.mxu0
    %v1235 = vadd.f32 0.0, %v1234
    %1236 = vdwg.mxu0
    %1237 = vset.pattern.permute.xlu0 33
    %1238 = vperm.xlu0 %1237, %v1147
    %v1239 = vpop.permute.xlu0 %1238
    %1241 = vset.pattern.permute.xlu0 33
    %1242 = vperm.xlu0 %1241, %v1149
    %v1243 = vpop.permute.xlu0 %1242
    %v1245 = vperm.slane %v1174, 1
    %v1246 = vadd.f32 %v1239, %v1245
    %v1247 = vadd.f32 %v1243, %v1245
    %v1248 = vmul.f32 %v1246, 0.2
    %v1249 = vmul.f32 %v1247, 0.2
    %v1250 = vmax.f32 %v1246, %v1248
    %v1251 = vmax.f32 %v1247, %v1249
    %v1252 = vsel %vm118, %v1250, -1e+30
    %v1253 = vsel %vm119, %v1251, -1e+30
    %v1254 = vsel %vm139, %v1252, -inf
    %1255 = vmax.xlane.f32.xlu0 %v1254
    %v1256 = vpop.xlane.xlu0 %1255
    %v1257 = vsel %vm139, %v1253, -inf
    %1258 = vmax.xlane.f32.xlu0 %v1257
    %v1259 = vpop.xlane.xlu0 %1258
    %v1260 = vsub.f32 %v1252, %v1256
    %v1261 = vsub.f32 %v1253, %v1259
    %v1262 = vmul.f32 %v1260, 1.442695
    %v1263 = vpow.pop %v1262
    %v1264 = vmul.f32 %v1261, 1.442695
    %v1265 = vpow.pop %v1264
    %v1266 = vsel %vm139, %v1263, 0.0
    %1267 = vadd.xlane.f32.xlu0 %v1266
    %v1268 = vpop.xlane.xlu0 %1267
    %v1269 = vsel %vm139, %v1265, 0.0
    %1270 = vadd.xlane.f32.xlu0 %v1269
    %v1271 = vpop.xlane.xlu0 %1270
    %v1272 = vrcp.pop %v1268
    %v1273 = vrcp.pop %v1271
    %v1274 = vmul.f32 %v1263, %v1272
    %v1275 = vmul.f32 %v1265, %v1273
    %v1276 = vpack.c.bf16 %v1275, %v1274
    %1277 = vrot.lane.b32.xlu0 %v1157, 120
    %v1278 = vpop.permute.xlu0 %1277
    %v1281 = vsel %vm139, %v1276, 0
    %1283 = vmatpush.bf16.msra.mxu0 0
    %1284 = vmatpush.bf16.msra.mxu0 0
    %1285 = vmatpush.bf16.msra.mxu0 0
    %1286 = vmatpush.bf16.msra.mxu0 0
    %1287 = vmatpush.bf16.msra.mxu0 0
    %1288 = vmatpush.bf16.msra.mxu0 0
    %1289 = vmatpush.bf16.msra.mxu0 0
    %1290 = vmatpush.bf16.msra.mxu0 %v1278
    %1291 = vmatmul.bf16.gmra.mxu0 %v1281
    %v1292 = vpop.f32.mrf.mxu0
    %v1293 = vadd.f32 0.0, %v1292
    %v1294 = vpop.f32.mrf.mxu0
    %v1295 = vadd.f32 0.0, %v1294
    %1296 = vdwg.mxu0
    %1297 = vset.pattern.permute.xlu0 34
    %1298 = vperm.xlu0 %1297, %v1147
    %v1299 = vpop.permute.xlu0 %1298
    %1301 = vset.pattern.permute.xlu0 34
    %1302 = vperm.xlu0 %1301, %v1149
    %v1303 = vpop.permute.xlu0 %1302
    %v1305 = vperm.slane %v1174, 2
    %v1306 = vadd.f32 %v1299, %v1305
    %v1307 = vadd.f32 %v1303, %v1305
    %v1308 = vmul.f32 %v1306, 0.2
    %v1309 = vmul.f32 %v1307, 0.2
    %v1310 = vmax.f32 %v1306, %v1308
    %v1311 = vmax.f32 %v1307, %v1309
    %v1312 = vsel %vm118, %v1310, -1e+30
    %v1313 = vsel %vm119, %v1311, -1e+30
    %v1314 = vsel %vm139, %v1312, -inf
    %1315 = vmax.xlane.f32.xlu0 %v1314
    %v1316 = vpop.xlane.xlu0 %1315
    %v1317 = vsel %vm139, %v1313, -inf
    %1318 = vmax.xlane.f32.xlu0 %v1317
    %v1319 = vpop.xlane.xlu0 %1318
    %v1320 = vsub.f32 %v1312, %v1316
    %v1321 = vsub.f32 %v1313, %v1319
    %v1322 = vmul.f32 %v1320, 1.442695
    %v1323 = vpow.pop %v1322
    %v1324 = vmul.f32 %v1321, 1.442695
    %v1325 = vpow.pop %v1324
    %v1326 = vsel %vm139, %v1323, 0.0
    %1327 = vadd.xlane.f32.xlu0 %v1326
    %v1328 = vpop.xlane.xlu0 %1327
    %v1329 = vsel %vm139, %v1325, 0.0
    %1330 = vadd.xlane.f32.xlu0 %v1329
    %v1331 = vpop.xlane.xlu0 %1330
    %v1332 = vrcp.pop %v1328
    %v1333 = vrcp.pop %v1331
    %v1334 = vmul.f32 %v1323, %v1332
    %v1335 = vmul.f32 %v1325, %v1333
    %v1336 = vpack.c.bf16 %v1335, %v1334
    %1337 = vrot.lane.b32.xlu0 %v1157, 112
    %v1338 = vpop.permute.xlu0 %1337
    %v1341 = vsel %vm139, %v1336, 0
    %1343 = vmatpush.bf16.msra.mxu0 0
    %1344 = vmatpush.bf16.msra.mxu0 0
    %1345 = vmatpush.bf16.msra.mxu0 0
    %1346 = vmatpush.bf16.msra.mxu0 0
    %1347 = vmatpush.bf16.msra.mxu0 0
    %1348 = vmatpush.bf16.msra.mxu0 0
    %1349 = vmatpush.bf16.msra.mxu0 0
    %1350 = vmatpush.bf16.msra.mxu0 %v1338
    %1351 = vmatmul.bf16.gmra.mxu0 %v1341
    %v1352 = vpop.f32.mrf.mxu0
    %v1353 = vadd.f32 0.0, %v1352
    %v1354 = vpop.f32.mrf.mxu0
    %v1355 = vadd.f32 0.0, %v1354
    %1356 = vdwg.mxu0
    %1357 = vset.pattern.permute.xlu0 35
    %1358 = vperm.xlu0 %1357, %v1147
    %v1359 = vpop.permute.xlu0 %1358
    %1361 = vset.pattern.permute.xlu0 35
    %1362 = vperm.xlu0 %1361, %v1149
    %v1363 = vpop.permute.xlu0 %1362
    %v1365 = vperm.slane %v1174, 3
    %v1366 = vadd.f32 %v1359, %v1365
    %v1367 = vadd.f32 %v1363, %v1365
    %v1368 = vmul.f32 %v1366, 0.2
    %v1369 = vmul.f32 %v1367, 0.2
    %v1370 = vmax.f32 %v1366, %v1368
    %v1371 = vmax.f32 %v1367, %v1369
    %v1372 = vsel %vm118, %v1370, -1e+30
    %v1373 = vsel %vm119, %v1371, -1e+30
    %v1374 = vsel %vm139, %v1372, -inf
    %1375 = vmax.xlane.f32.xlu0 %v1374
    %v1376 = vpop.xlane.xlu0 %1375
    %v1377 = vsel %vm139, %v1373, -inf
    %1378 = vmax.xlane.f32.xlu0 %v1377
    %v1379 = vpop.xlane.xlu0 %1378
    %v1380 = vsub.f32 %v1372, %v1376
    %v1381 = vsub.f32 %v1373, %v1379
    %v1382 = vmul.f32 %v1380, 1.442695
    %v1383 = vpow.pop %v1382
    %v1384 = vmul.f32 %v1381, 1.442695
    %v1385 = vpow.pop %v1384
    %v1386 = vsel %vm139, %v1383, 0.0
    %1387 = vadd.xlane.f32.xlu0 %v1386
    %v1388 = vpop.xlane.xlu0 %1387
    %v1389 = vsel %vm139, %v1385, 0.0
    %1390 = vadd.xlane.f32.xlu0 %v1389
    %v1391 = vpop.xlane.xlu0 %1390
    %v1392 = vrcp.pop %v1388
    %v1393 = vrcp.pop %v1391
    %v1394 = vmul.f32 %v1383, %v1392
    %v1395 = vmul.f32 %v1385, %v1393
    %v1396 = vpack.c.bf16 %v1395, %v1394
    %1397 = vrot.lane.b32.xlu0 %v1157, 104
    %v1398 = vpop.permute.xlu0 %1397
    %v1401 = vsel %vm139, %v1396, 0
    %1403 = vmatpush.bf16.msra.mxu0 0
    %1404 = vmatpush.bf16.msra.mxu0 0
    %1405 = vmatpush.bf16.msra.mxu0 0
    %1406 = vmatpush.bf16.msra.mxu0 0
    %1407 = vmatpush.bf16.msra.mxu0 0
    %1408 = vmatpush.bf16.msra.mxu0 0
    %1409 = vmatpush.bf16.msra.mxu0 0
    %1410 = vmatpush.bf16.msra.mxu0 %v1398
    %1411 = vmatmul.bf16.gmra.mxu0 %v1401
    %v1412 = vpop.f32.mrf.mxu0
    %v1413 = vadd.f32 0.0, %v1412
    %v1414 = vpop.f32.mrf.mxu0
    %v1415 = vadd.f32 0.0, %v1414
    %1416 = vdwg.mxu0
    %1419 = vrot.lane.b32.xlu0 %v1293, 8
    %v1420 = vpop.permute.xlu0 %1419
    %1421 = vrot.lane.b32.xlu0 %v1295, 8
    %v1422 = vpop.permute.xlu0 %1421
    %1427 = vrot.lane.b32.xlu0 %v1353, 16
    %v1428 = vpop.permute.xlu0 %1427
    %1429 = vrot.lane.b32.xlu0 %v1355, 16
    %v1430 = vpop.permute.xlu0 %1429
    %1435 = vrot.lane.b32.xlu0 %v1413, 24
    %v1436 = vpop.permute.xlu0 %1435
    %1437 = vrot.lane.b32.xlu0 %v1415, 24
    %v1438 = vpop.permute.xlu0 %1437
    %v1441 = vsel %vm65, %v1233, %v1420
    %v1442 = vsel %vm65, %v1235, %v1422
    %v1443 = vsel %vm139, %v1441, %v1428
    %v1444 = vsel %vm139, %v1442, %v1430
    %v1445 = vsel %vm389, %v1443, %v1436
    %v1446 = vsel %vm389, %v1444, %v1438
    %v1448 = vperm.slane %v1121, 0
    %v1450 = vadd.f32 %v1445, %v1448
    %v1451 = vadd.f32 %v1446, %v1448
    %vm1452 = vcmp.gt.f32.partialorder %v1450, 0.0
    %vm1453 = vcmp.gt.f32.partialorder %v1451, 0.0
    %v1454 = vmin.f32 %v1450, 0.0
    %v1455 = vmin.f32 %v1451, 0.0
    %v1456 = vmul.f32 %v1454, 1.442695
    %v1457 = vpow.pop %v1456
    %v1458 = vmul.f32 %v1455, 1.442695
    %v1459 = vpow.pop %v1458
    %v1460 = vsub.f32 %v1457, 1.0
    %v1461 = vsub.f32 %v1459, 1.0
    %v1462 = vsel %vm1452, %v1450, %v1460
    %v1463 = vsel %vm1453, %v1451, %v1461
    %v1464 = vpack.c.bf16 %v1463, %v1462
    %v1465 = vld [vmem:[%s6] sm:$0x1]
    %v1467 = vsel %vm139, %v1465, 0
    %1469 = vmatpush.bf16.msra.mxu0 0
    %1470 = vmatpush.bf16.msra.mxu0 0
    %1471 = vmatpush.bf16.msra.mxu0 0
    %1472 = vmatpush.bf16.msra.mxu0 0
    %1473 = vmatpush.bf16.msra.mxu0 0
    %1474 = vmatpush.bf16.msra.mxu0 0
    %1475 = vmatpush.bf16.msra.mxu0 0
    %1476 = vmatpush.bf16.msra.mxu0 %v1464
    %1477 = vmatmul.bf16.gmra.mxu0 %v1467
    %v1478 = vpop.f32.mrf.mxu0
    %v1479 = vadd.f32 0.0, %v1478
    %v1480 = vpop.f32.mrf.mxu0
    %1481 = vdwg.mxu0
    %vm1482 = vcmask 254976
    %1483 = vst.msk [vmem:[#allocation6] sm:$0x3] %vm1482, %v1479
    %v1484 = vpack.c.bf16 %v1479, %v1479
    %v1485 = vld [vmem:[%s7] sm:$0xf]
    %v1486 = vld [vmem:[%s7 + $0x4] sm:$0xf]
    %v1487 = vld [vmem:[%s7 + $0x8] sm:$0xf]
    %v1488 = vld [vmem:[%s7 + $0xc] sm:$0xf]
    %v1489 = vld [vmem:[%s8] sm:$0x1]
    %v1491 = vperm.slane %v1489, 0
    %v1497 = vunpack.c.l.b16 %v1485
    %v1498 = vunpack.c.l.b16 %v1486
    %v1499 = vunpack.c.l.b16 %v1487
    %v1500 = vunpack.c.l.b16 %v1488
    %v1501 = vpack.c.b16 %v1498, %v1497
    %v1502 = vpack.c.b16 %v1500, %v1499
    %v1506 = vsel %vm94, %v1484, 0
    %1508 = vmatpush.bf16.msra.mxu0 0
    %1509 = vmatpush.bf16.msra.mxu0 0
    %1510 = vmatpush.bf16.msra.mxu0 0
    %1511 = vmatpush.bf16.msra.mxu0 0
    %1512 = vmatpush.bf16.msra.mxu0 0
    %1513 = vmatpush.bf16.msra.mxu0 0
    %1514 = vmatpush.bf16.msra.mxu0 %v1502
    %1515 = vmatpush.bf16.msra.mxu0 %v1501
    %1516 = vmatmul.bf16.gmra.mxu0 %v1506
    %v1517 = vpop.f32.mrf.mxu0
    %v1518 = vadd.f32 %v1491, %v1517
    %v1519 = vpop.f32.mrf.mxu0
    %1520 = vdwg.mxu0
    %v1521 = vmax.f32 %v1518, 0.0
    %v1522 = vpack.c.bf16 %v1521, %v1521
    %v1523 = vld [vmem:[%s9] sm:$0xf]
    %v1524 = vld [vmem:[%s9 + $0x4] sm:$0xf]
    %v1525 = vld [vmem:[%s9 + $0x8] sm:$0xf]
    %v1526 = vld [vmem:[%s9 + $0xc] sm:$0xf]
    %v1527 = vld [vmem:[%s10] sm:$0x1]
    %v1529 = vperm.slane %v1527, 0
    %v1535 = vunpack.c.l.b16 %v1523
    %v1536 = vunpack.c.l.b16 %v1524
    %v1537 = vunpack.c.l.b16 %v1525
    %v1538 = vunpack.c.l.b16 %v1526
    %v1539 = vpack.c.b16 %v1536, %v1535
    %v1540 = vpack.c.b16 %v1538, %v1537
    %v1544 = vsel %vm94, %v1522, 0
    %1546 = vmatpush.bf16.msra.mxu0 0
    %1547 = vmatpush.bf16.msra.mxu0 0
    %1548 = vmatpush.bf16.msra.mxu0 0
    %1549 = vmatpush.bf16.msra.mxu0 0
    %1550 = vmatpush.bf16.msra.mxu0 0
    %1551 = vmatpush.bf16.msra.mxu0 0
    %1552 = vmatpush.bf16.msra.mxu0 %v1540
    %1553 = vmatpush.bf16.msra.mxu0 %v1539
    %1554 = vmatmul.bf16.gmra.mxu0 %v1544
    %v1555 = vpop.f32.mrf.mxu0
    %v1556 = vadd.f32 %v1529, %v1555
    %v1557 = vpop.f32.mrf.mxu0
    %1558 = vdwg.mxu0
    %vm1559 = vcmask 17408
    %v1560 = vsel %vm1559, %v1556, -inf
    %1561 = vmax.xlane.f32.xlu0 %v1560
    %v1562 = vpop.xlane.xlu0 %1561
    %v1563 = vsub.f32 %v1556, %v1562
    %v1564 = vmul.f32 %v1563, 1.442695
    %v1565 = vpow.pop %v1564
    %v1566 = vsel %vm1559, %v1565, 0.0
    %1567 = vadd.xlane.f32.xlu0 %v1566
    %v1568 = vpop.xlane.xlu0 %1567
    %v1569 = vlog2.pop %v1568
    %v1570 = vmul.f32 %v1569, 0.6931472
    %v1571 = vsub.f32 %v1563, %v1570
    %1572 = vst.msk [vmem:[#allocation5] sm:$0x3] %vm1559, %v1571
    // Predicated region
    $region50: #{tpu_custom_call.1} parent=1 // pred_check
      _
    $region51: #{tpu_custom_call.1} parent=1 // pred_check_branch
      %1574 = sbr.rel (0) target = $region53
    $region52: #{tpu_custom_call.1} parent=1 // pred_region
      %1576 = vsyncadd [#allocation4], 0
      %s1578 = sshll.u32 [#allocation5], 4
      %s1579 = int_to_ptr.vmem [resolvable:$true] %s1578
      %s1580 = sshll.u32 %s11, 4
      %s1581 = int_to_ptr.hbm [resolvable:$true] %s1580
      %1583 = dma.vmem_to_hbm [thread:$0]  %s1579, 32, %s1581, [#allocation4]
    $region53: #{tpu_custom_call.1} parent=1 // pred_fallthru
      _
    // Predicated region
    $region54: #{tpu_custom_call.1} parent=1 // pred_check
      _
    $region55: #{tpu_custom_call.1} parent=1 // pred_check_branch
      %1585 = sbr.rel (0) target = $region57
    $region56: #{tpu_custom_call.1} parent=1 // pred_region
      %1587 = vsyncadd [#allocation7], 0
      %s1589 = sshll.u32 [#allocation6], 4
      %s1590 = int_to_ptr.vmem [resolvable:$true] %s1589
      %s1591 = sshll.u32 %s12, 4
      %s1592 = int_to_ptr.hbm [resolvable:$true] %s1591
      %1594 = dma.vmem_to_hbm [thread:$0]  %s1590, 32, %s1592, [#allocation7]
    $region57: #{tpu_custom_call.1} parent=1 // pred_fallthru
      _
    // Predicated region
    $region58: #{tpu_custom_call.1} parent=1 // pred_check
      _
    $region59: #{tpu_custom_call.1} parent=1 // pred_check_branch
      %1596 = sbr.rel (0) target = $region61
    $region60: #{tpu_custom_call.1} parent=1 // pred_region
      %1598 = dma.done [#allocation4], 32
    $region61: #{tpu_custom_call.1} parent=1 // pred_fallthru
      _
    // Predicated region
    $region62: #{tpu_custom_call.1} parent=1 // pred_check
      _
    $region63: #{tpu_custom_call.1} parent=1 // pred_check_branch
      %1600 = sbr.rel (0) target = $region65
    $region64: #{tpu_custom_call.1} parent=1 // pred_region
      %1602 = dma.done [#allocation7], 32
    $region65: #{tpu_custom_call.1} parent=1 // pred_fallthru
      _
    %1603 = vsyncpa [#allocation3], 1
    %1604 = vsyncpa [#allocation4], 1
    %1605 = vsyncpa [#allocation7], 1

</llo_original>
